<compile_context>
chip_gen: v7x
topology: tpu7x:2x2x1
jax: 0.10.0
libtpu: 0.0.40
codegen_flags: <defaults>
</compile_context>

<pallas_src>
import functools

import jax
import jax.numpy as jnp
from jax.experimental import pallas as pl
from jax.experimental.pallas import tpu as pltpu

LANES = 128
SUBLANES = 8
# Below this element count the fixed pallas_call launch/writeback cost dominates;
# plain jnp is strictly faster (perf-review fast path).
_SMALL_INPUT_ELEMS = 1 << 17  # 128K elements
# Keep >= 4 grid blocks so v7x's two TensorCores stay busy and balanced.
_MIN_TILES = 4


def _charbonnier_partial_kernel(x_ref, y_ref, out_ref, *, eps):
    # Upcast in-kernel: HBM traffic stays at the native dtype width.
    x = x_ref[...].astype(jnp.float32)
    y = y_ref[...].astype(jnp.float32)
    diff = x - y
    err = jnp.sqrt(diff * diff + jnp.float32(eps))  # sqrt -> EUP; rest -> VPU

    # Fold (tile_rows, 128) -> (8, 128): each group of 8 rows is one native
    # (8,128) f32 vreg tile, so the reshape is layout-free and the reduction
    # over the leading axis is pure vreg-wise VPU adds (no cross-lane work).
    tile_rows = x_ref.shape[0]
    out_ref[0] = err.reshape(tile_rows // SUBLANES, SUBLANES, LANES).sum(axis=0)


def _charbonnier_ref(x, y, eps):
    x = x.astype(jnp.float32)
    y = y.astype(jnp.float32)
    d = x - y
    return jnp.sum(jnp.sqrt(d * d + jnp.float32(eps)))


def l1_charbonnier_loss(X, Y, eps=1e-6, tile_rows=4096):
    """loss = sum(sqrt((X - Y)^2 + eps)) over all elements (PyTorch semantics)."""
    assert X.shape == Y.shape
    n = X.size
    x = X.reshape(-1)
    y = Y.reshape(-1)

    itemsize = jnp.dtype(X.dtype).itemsize
    # Sub-32-bit dtypes pack along sublanes: keep tile rows a multiple of the
    # packed tile height so input loads stay unmasked (8 f32 / 16 bf16 / 32 i8).
    sublane_mult = SUBLANES * max(1, 4 // itemsize)

    rows_total = n // LANES

    # Small-input fast path: pallas_call launch + partial writeback + the
    # separate partial/tail sums dominate below ~128K elements.
    if n < _SMALL_INPUT_ELEMS or rows_total < _MIN_TILES * sublane_mult:
        return _charbonnier_ref(x, y, eps)

    # Keep at least _MIN_TILES grid blocks so v7x's two TensorCores both get
    # work; otherwise use the big default tile (2 MiB/input/buffer at f32,
    # 8 MiB total double-buffered -> fits every generation's scoped VMEM).
    if rows_total < tile_rows * _MIN_TILES:
        tile_rows = max(
            sublane_mult, (rows_total // _MIN_TILES) // sublane_mult * sublane_mult
        )

    tile_elems = tile_rows * LANES
    num_tiles = n // tile_elems
    main_elems = num_tiles * tile_elems

    # Prefix slice + reshape of a contiguous flat array: no pad copy.
    xm = x[:main_elems].reshape(num_tiles * tile_rows, LANES)
    ym = y[:main_elems].reshape(num_tiles * tile_rows, LANES)

    kernel = functools.partial(_charbonnier_partial_kernel, eps=eps)
    partials = pl.pallas_call(
        kernel,
        out_shape=jax.ShapeDtypeStruct((num_tiles, SUBLANES, LANES), jnp.float32),
        grid_spec=pltpu.PrefetchScalarGridSpec(
            num_scalar_prefetch=0,
            grid=(num_tiles,),
            in_specs=[
                pl.BlockSpec((tile_rows, LANES), lambda i: (i, 0)),
                pl.BlockSpec((tile_rows, LANES), lambda i: (i, 0)),
            ],
            out_specs=pl.BlockSpec((1, SUBLANES, LANES), lambda i: (i, 0, 0)),
        ),
        compiler_params=pltpu.CompilerParams(
            # Independent per-block partials -> grid axis can use both
            # TensorCores on v7x; neutral on v5e/v6e.
            dimension_semantics=("parallel",),
        ),
        # Advisory: lets XLA overlap the kernel with the partial/tail sums.
        cost_estimate=pl.CostEstimate(
            flops=5 * main_elems,
            transcendentals=main_elems,
            bytes_accessed=2 * main_elems * itemsize
            + num_tiles * SUBLANES * LANES * 4,
        ),
    )(xm, ym)
    total = jnp.sum(partials)

    # Tail (< tile_rows * 128 elements): plain JAX in the wrapper; avoids both
    # a full-array pad copy and per-step masking inside the kernel.
    if main_elems < n:
        total = total + _charbonnier_ref(x[main_elems:], y[main_elems:], eps)

    return total


if __name__ == "__main__":
    key = jax.random.PRNGKey(0)
    k1, k2, k3, k4 = jax.random.split(key, 4)

    # Spec-sized small input (NCHW, as the SRDenseNet loss sees it): exercises
    # the plain-JAX fast path.
    Xs = jax.random.normal(k1, (2, 4, 16, 16), dtype=jnp.float32)
    Ys = jax.random.normal(k2, (2, 4, 16, 16), dtype=jnp.float32)
    loss_s = jax.block_until_ready(l1_charbonnier_loss(Xs, Ys))
    ref_s = _charbonnier_ref(Xs, Ys, 1e-6)
    assert jnp.allclose(loss_s, ref_s, rtol=1e-5, atol=1e-5), (loss_s, ref_s)

    # Image-sized input: exercises the Pallas kernel path (4 grid blocks).
    Xl = jax.random.normal(k3, (2, 3, 256, 256), dtype=jnp.float32)
    Yl = jax.random.normal(k4, (2, 3, 256, 256), dtype=jnp.float32)
    loss_l = jax.block_until_ready(l1_charbonnier_loss(Xl, Yl))
    ref_l = _charbonnier_ref(Xl, Yl, 1e-6)
    assert jnp.allclose(loss_l, ref_l, rtol=1e-4, atol=1e-3), (loss_l, ref_l)

    print("KERNEL_OK")
</pallas_src>

<mosaic_0001>
module attributes {stable_mosaic.version = 11 : i64} {
  func.func @_charbonnier_partial_kernel(%arg0: i32, %arg1: memref<768x128xf32, #tpu.memory_space<vmem>>, %arg2: memref<768x128xf32, #tpu.memory_space<vmem>>, %arg3: memref<1x8x128xf32, #tpu.memory_space<vmem>>) attributes {dimension_semantics = [#tpu.dimension_semantics<parallel>], iteration_bounds = array<i64: 4>, scalar_prefetch = 0 : i64, scratch_operands = 0 : i64, tpu.core_type = #tpu.core_type<tc>, window_params = [{transform_indices = @transform_0, window_bounds = array<i64: 768, 128>}, {transform_indices = @transform_1, window_bounds = array<i64: 768, 128>}, {transform_indices = @transform_2, window_bounds = array<i64: 1, 8, 128>}]} {
    %c0 = arith.constant 0 : index
    %c0_0 = arith.constant 0 : index
    %0 = vector.load %arg1[%c0, %c0_0] : memref<768x128xf32, #tpu.memory_space<vmem>>, vector<768x128xf32>
    %c0_1 = arith.constant 0 : index
    %c0_2 = arith.constant 0 : index
    %1 = vector.load %arg2[%c0_1, %c0_2] : memref<768x128xf32, #tpu.memory_space<vmem>>, vector<768x128xf32>
    %2 = arith.subf %0, %1 : vector<768x128xf32>
    %3 = arith.mulf %2, %2 : vector<768x128xf32>
    %cst = arith.constant 9.99999997E-7 : f32
    %4 = vector.broadcast %cst : f32 to vector<768x128xf32>
    %5 = arith.addf %3, %4 : vector<768x128xf32>
    %6 = math.sqrt %5 : vector<768x128xf32>
    %7 = vector.shape_cast %6 : vector<768x128xf32> to vector<96x8x128xf32>
    %cst_3 = arith.constant dense<0.000000e+00> : vector<8x128xf32>
    %8 = vector.multi_reduction <add>, %7, %cst_3 [0] : vector<96x8x128xf32> to vector<8x128xf32>
    %c0_4 = arith.constant 0 : index
    %c0_5 = arith.constant 0 : index
    %c0_6 = arith.constant 0 : index
    %9 = vector.load %arg3[%c0_4, %c0_5, %c0_6] : memref<1x8x128xf32, #tpu.memory_space<vmem>>, vector<1x8x128xf32>
    %10 = vector.shape_cast %9 : vector<1x8x128xf32> to vector<8x128xf32>
    %11 = vector.shape_cast %8 : vector<8x128xf32> to vector<1x8x128xf32>
    tpu.vector_store %arg3[%c0_4, %c0_5, %c0_6], %11 {strides = array<i32>} : memref<1x8x128xf32, #tpu.memory_space<vmem>>, vector<1x8x128xf32>,
    return
  }
  func.func @transform_0(%arg0: i32) -> (i32, i32) {
    %c0_i32 = arith.constant 0 : i32
    %c0_i32_0 = arith.constant 0 : i32
    return %arg0, %c0_i32 : i32, i32
  }
  func.func @transform_1(%arg0: i32) -> (i32, i32) {
    %c0_i32 = arith.constant 0 : i32
    %c0_i32_0 = arith.constant 0 : i32
    return %arg0, %c0_i32 : i32, i32
  }
  func.func @transform_2(%arg0: i32) -> (i32, i32, i32) {
    %c0_i32 = arith.constant 0 : i32
    %c0_i32_0 = arith.constant 0 : i32
    %c0_i32_1 = arith.constant 0 : i32
    return %arg0, %c0_i32, %c0_i32_0 : i32, i32, i32
  }
}

</mosaic_0001>

<llo_original>
// kernel: tpu_custom_call.1
$region0: #{tpu_custom_call.1}
  #allocation0 [shape = 'u32[]', space=smem, size = 0x4, offset = 0x4, fixed_abs, tag = 'smem constant byte address 0x4 - core index']
  #allocation1 [shape = 'u32[144,128]{1,0:T(1,128)}', space=vmem, size = 0x12000, scoped, tag = 'internal scratch']
  %s0 = inlined_call_operand.hbm [shape: f32[3072,128], index: 0, kind: input, shape index: {}]
  %s1 = inlined_call_operand.hbm [shape: f32[3072,128], index: 1, kind: input, shape index: {}]
  %s2 = inlined_call_operand.hbm [shape: f32[4,8,128], index: 2, kind: output, shape index: {}]
  %s3 = sld [smem:[#allocation0]]
  $region49: #{tpu_custom_call.1} parent=0
    _
  %s5 = ssub.s32 1, %s3
  %s6 = scalar_select 0, %s5, %s3
  $region1: #{tpu_custom_call.1} parent=0
    #allocation2 [shape = 'u8[786432]{0}', space=vmem, size = 0xc0000, scoped, tag = 'input window, operand 0']
    #allocation3 [shape = 's32[2]{0}', space=sflag, size = 0x8, scoped, tag = 'scoped memory for tpu_custom_call.1']
    #allocation4 [shape = 's32[2]{0}', space=sflag, size = 0x8, scoped, tag = 'scoped memory for tpu_custom_call.1']
    #allocation5 [shape = 'u8[786432]{0}', space=vmem, size = 0xc0000, scoped, tag = 'input window, operand 1']
    #allocation6 [shape = 's32[2]{0}', space=sflag, size = 0x8, scoped, tag = 'scoped memory for tpu_custom_call.1']
    #allocation7 [shape = 'u8[8192]{0}', space=vmem, size = 0x2000, scoped, tag = 'output window, operand 0']
    %7 = vsyncpa [#allocation3], 0
    %s8 = scalar_lea.sflag [#allocation3], 1
    %9 = vsyncpa %s8, 0
    %10 = vsyncpa [#allocation6], 0
    %s11 = scalar_lea.sflag [#allocation6], 1
    %12 = vsyncpa %s11, 0
    %13 = vsyncpa [#allocation4], 0
    %s14 = scalar_lea.sflag [#allocation4], 1
    %15 = vsyncpa %s14, 0
    loop: start=0, step=1, limit=6
    $region2: #{tpu_custom_call.1} parent=1 // loop_pre_header
      _
    $region3: #{tpu_custom_call.1} parent=1 // loop_header
      %s17 = sphi 0, %s21
      %p18 = scmp.ge.s32.totalorder %s17, 6
      %s27 = sphi 0, %s29
      %s30 = sphi 0, %s27
      %s31 = sphi 0, %s30
      %s47 = sphi 0, %s31
      %s53 = sphi 0, %s55
      %s56 = sphi 0, %s53
      %s57 = sphi 0, %s56
      %s73 = sphi 0, %s57
      %s79 = sphi 0, %s81
      %s82 = sphi 0, %s79
      %s83 = sphi 0, %s82
      %s99 = sphi 0, %s83
    $region4: #{tpu_custom_call.1} parent=1 // loop_header_branch
      %20 = sbr.rel (%p18) target = $region8
    $region5: #{tpu_custom_call.1} parent=1 // loop_body
      %s22 = ssub.s32 %s17, 1
      %s23 = ssub.s32 %s17, 2
      %s24 = sadd.s32 %s17, 1
      %s25 = ssub.s32 %s17, %s24
      %p26 = scmp.eq.s32.totalorder %s25, 0
      %s28 = sadd.s32 %s27, 1
      %s29 = scalar_select %p26, %s27, %s28
      %p32 = pneg %p26
      %p33 = scmp.eq.s32.totalorder %s17, 3
      %p34 = por %p32, %p33
      %p35 = scmp.ne.s32.totalorder %s27, %s30
      %p36 = scmp.eq.s32.totalorder %s17, 0
      %p37 = por %p35, %p36
      %p38 = scmp.ne.s32.totalorder %s27, %s30
      %p39 = scmp.eq.s32.totalorder %s22, 3
      %p40 = por %p38, %p39
      %p41 = scmp.ne.s32.totalorder %s30, %s31
      %p42 = scmp.eq.s32.totalorder %s22, 0
      %p43 = por %p41, %p42
      %p44 = scmp.ne.s32.totalorder %s30, %s31
      %p45 = scmp.eq.s32.totalorder %s23, 3
      %p46 = por %p44, %p45
      %p48 = scmp.ne.s32.totalorder %s31, %s47
      %p49 = scmp.eq.s32.totalorder %s23, 0
      %p50 = por %p48, %p49
      %s51 = ssub.s32 %s17, %s24
      %p52 = scmp.eq.s32.totalorder %s51, 0
      %s54 = sadd.s32 %s53, 1
      %s55 = scalar_select %p52, %s53, %s54
      %p58 = pneg %p52
      %p59 = scmp.eq.s32.totalorder %s17, 3
      %p60 = por %p58, %p59
      %p61 = scmp.ne.s32.totalorder %s53, %s56
      %p62 = scmp.eq.s32.totalorder %s17, 0
      %p63 = por %p61, %p62
      %p64 = scmp.ne.s32.totalorder %s53, %s56
      %p65 = scmp.eq.s32.totalorder %s22, 3
      %p66 = por %p64, %p65
      %p67 = scmp.ne.s32.totalorder %s56, %s57
      %p68 = scmp.eq.s32.totalorder %s22, 0
      %p69 = por %p67, %p68
      %p70 = scmp.ne.s32.totalorder %s56, %s57
      %p71 = scmp.eq.s32.totalorder %s23, 3
      %p72 = por %p70, %p71
      %p74 = scmp.ne.s32.totalorder %s57, %s73
      %p75 = scmp.eq.s32.totalorder %s23, 0
      %p76 = por %p74, %p75
      %s77 = ssub.s32 %s17, %s24
      %p78 = scmp.eq.s32.totalorder %s77, 0
      %s80 = sadd.s32 %s79, 1
      %s81 = scalar_select %p78, %s79, %s80
      %p84 = pneg %p78
      %p85 = scmp.eq.s32.totalorder %s17, 3
      %p86 = por %p84, %p85
      %p87 = scmp.ne.s32.totalorder %s79, %s82
      %p88 = scmp.eq.s32.totalorder %s17, 0
      %p89 = por %p87, %p88
      %p90 = scmp.ne.s32.totalorder %s79, %s82
      %p91 = scmp.eq.s32.totalorder %s22, 3
      %p92 = por %p90, %p91
      %p93 = scmp.ne.s32.totalorder %s82, %s83
      %p94 = scmp.eq.s32.totalorder %s22, 0
      %p95 = por %p93, %p94
      %p96 = scmp.ne.s32.totalorder %s82, %s83
      %p97 = scmp.eq.s32.totalorder %s23, 3
      %p98 = por %p96, %p97
      %p100 = scmp.ne.s32.totalorder %s83, %s99
      %p101 = scmp.eq.s32.totalorder %s23, 0
      %p102 = por %p100, %p101
      %p103 = scmp.le.s32.totalorder 1, %s17
      %p104 = scmp.lt.s32.totalorder %s17, 5
      %p105 = pnand %p103, %p104
      %p106 = pneg %p105
      // Predicated region
      $region9: #{tpu_custom_call.1} parent=5 // pred_check
        _
      $region10: #{tpu_custom_call.1} parent=5 // pred_check_branch
        %108 = sbr.rel (%p105) target = $region12
      $region11: #{tpu_custom_call.1} parent=5 // pred_region
        %s109 = ssub.s32 %s17, 1
      $region12: #{tpu_custom_call.1} parent=5 // pred_fallthru
        _
      %p110 = scmp.lt.s32.totalorder %s17, 4
      // Predicated region
      $region13: #{tpu_custom_call.1} parent=5 // pred_check
        %p111 = pneg %p110
      $region14: #{tpu_custom_call.1} parent=5 // pred_check_branch
        %113 = sbr.rel (%p111) target = $region16
      $region15: #{tpu_custom_call.1} parent=5 // pred_region
        // Predicated region
        $region17: #{tpu_custom_call.1} parent=15 // pred_check
          %p114 = pneg %p37
        $region18: #{tpu_custom_call.1} parent=15 // pred_check_branch
          %116 = sbr.rel (%p114) target = $region20
        $region19: #{tpu_custom_call.1} parent=15 // pred_region
          %s117 = sand.u32 %s27, 1
          %s118 = scalar_lea.sflag [#allocation3], %s117
          %s119 = sand.u32 %s27, 1
          %s120 = smul.addr %s119, 768
          %s121 = scalar_lea.vmem [#allocation2], %s120
          %s122 = smul.u32 96, %s17
          %s124 = ssub.s32 12288, 12288
          %125 = vsyncadd %s118, %s124
          %s126 = smul.addr %s122, 128
          %s127 = scalar_lea.hbm %s0, %s126
          %s128 = sshll.u32 %s121, 4
          %s129 = int_to_ptr.vmem [resolvable:$true] %s128
          %134 = dma.hbm_to_vmem [thread:$0]  %s127, 12288, %s129, %s118, 128, 128, 8
        $region20: #{tpu_custom_call.1} parent=15 // pred_fallthru
          _
        // Predicated region
        $region21: #{tpu_custom_call.1} parent=15 // pred_check
          %p135 = pneg %p63
        $region22: #{tpu_custom_call.1} parent=15 // pred_check_branch
          %137 = sbr.rel (%p135) target = $region24
        $region23: #{tpu_custom_call.1} parent=15 // pred_region
          %s138 = sand.u32 %s53, 1
          %s139 = scalar_lea.sflag [#allocation6], %s138
          %s140 = sand.u32 %s53, 1
          %s141 = smul.addr %s140, 768
          %s142 = scalar_lea.vmem [#allocation5], %s141
          %s143 = smul.u32 96, %s17
          %s145 = ssub.s32 12288, 12288
          %146 = vsyncadd %s139, %s145
          %s147 = smul.addr %s143, 128
          %s148 = scalar_lea.hbm %s1, %s147
          %s149 = sshll.u32 %s142, 4
          %s150 = int_to_ptr.vmem [resolvable:$true] %s149
          %155 = dma.hbm_to_vmem [thread:$0]  %s148, 12288, %s150, %s139, 128, 128, 8
        $region24: #{tpu_custom_call.1} parent=15 // pred_fallthru
          _
      $region16: #{tpu_custom_call.1} parent=5 // pred_fallthru
        _
      %p156 = scmp.le.s32.totalorder 1, %s17
      %p157 = scmp.lt.s32.totalorder %s17, 5
      %p158 = pnand %p156, %p157
      %p159 = pneg %p158
      // Predicated region
      $region25: #{tpu_custom_call.1} parent=5 // pred_check
        _
      $region26: #{tpu_custom_call.1} parent=5 // pred_check_branch
        %161 = sbr.rel (%p158) target = $region28
      $region27: #{tpu_custom_call.1} parent=5 // pred_region
        %s162 = ssub.s32 %s17, 1
        %s163 = sand.u32 %s30, 1
        %s164 = scalar_lea.sflag [#allocation3], %s163
        %s165 = sand.u32 %s30, 1
        %s166 = smul.addr %s165, 768
        %s167 = scalar_lea.vmem [#allocation2], %s166
        // Predicated region
        $region29: #{tpu_custom_call.1} parent=27 // pred_check
          %p168 = pneg %p43
        $region30: #{tpu_custom_call.1} parent=27 // pred_check_branch
          %170 = sbr.rel (%p168) target = $region32
        $region31: #{tpu_custom_call.1} parent=27 // pred_region
          %171 = dma.done %s164, 12288
        $region32: #{tpu_custom_call.1} parent=27 // pred_fallthru
          _
        %s172 = sand.u32 %s56, 1
        %s173 = scalar_lea.sflag [#allocation6], %s172
        %s174 = sand.u32 %s56, 1
        %s175 = smul.addr %s174, 768
        %s176 = scalar_lea.vmem [#allocation5], %s175
        // Predicated region
        $region33: #{tpu_custom_call.1} parent=27 // pred_check
          %p177 = pneg %p69
        $region34: #{tpu_custom_call.1} parent=27 // pred_check_branch
          %179 = sbr.rel (%p177) target = $region36
        $region35: #{tpu_custom_call.1} parent=27 // pred_region
          %180 = dma.done %s173, 12288
        $region36: #{tpu_custom_call.1} parent=27 // pred_fallthru
          _
        %s181 = sand.u32 %s30, 1
        %s182 = scalar_lea.sflag [#allocation3], %s181
        %s183 = sand.u32 %s30, 1
        %s184 = smul.addr %s183, 768
        %s185 = scalar_lea.vmem [#allocation2], %s184
        %p186 = pneg %p43
        %p187 = pneg %p40
        %s188 = sand.u32 %s56, 1
        %s189 = scalar_lea.sflag [#allocation6], %s188
        %s190 = sand.u32 %s56, 1
        %s191 = smul.addr %s190, 768
        %s192 = scalar_lea.vmem [#allocation5], %s191
        %p193 = pneg %p69
        %p194 = pneg %p66
        %p195 = pneg %p95
        %p196 = pneg %p92
        %s197 = sand.u32 %s82, 1
        %s198 = scalar_lea.sflag [#allocation4], %s197
        %s199 = sand.u32 %s82, 1
        %s200 = smul.addr %s199, 8
        %s201 = scalar_lea.vmem [#allocation7], %s200
        %s202 = smul.u32 96, %s22
        %s203 = smul.u32 96, %s22
        %v204 = vld [vmem:[%s167] sm:$0xff]
        %v205 = vld [vmem:[%s167 + $0x8] sm:$0xff]
        %v206 = vld [vmem:[%s167 + $0x10] sm:$0xff]
        %v207 = vld [vmem:[%s167 + $0x18] sm:$0xff]
        %v208 = vld [vmem:[%s167 + $0x20] sm:$0xff]
        %v209 = vld [vmem:[%s167 + $0x28] sm:$0xff]
        %v210 = vld [vmem:[%s167 + $0x30] sm:$0xff]
        %v211 = vld [vmem:[%s167 + $0x38] sm:$0xff]
        %v212 = vld [vmem:[%s167 + $0x40] sm:$0xff]
        %v213 = vld [vmem:[%s167 + $0x48] sm:$0xff]
        %v214 = vld [vmem:[%s167 + $0x50] sm:$0xff]
        %v215 = vld [vmem:[%s167 + $0x58] sm:$0xff]
        %v216 = vld [vmem:[%s167 + $0x60] sm:$0xff]
        %v217 = vld [vmem:[%s167 + $0x68] sm:$0xff]
        %v218 = vld [vmem:[%s167 + $0x70] sm:$0xff]
        %v219 = vld [vmem:[%s167 + $0x78] sm:$0xff]
        %v220 = vld [vmem:[%s167 + $0x80] sm:$0xff]
        %v221 = vld [vmem:[%s167 + $0x88] sm:$0xff]
        %v222 = vld [vmem:[%s167 + $0x90] sm:$0xff]
        %v223 = vld [vmem:[%s167 + $0x98] sm:$0xff]
        %v224 = vld [vmem:[%s167 + $0xa0] sm:$0xff]
        %v225 = vld [vmem:[%s167 + $0xa8] sm:$0xff]
        %v226 = vld [vmem:[%s167 + $0xb0] sm:$0xff]
        %v227 = vld [vmem:[%s167 + $0xb8] sm:$0xff]
        %v228 = vld [vmem:[%s167 + $0xc0] sm:$0xff]
        %v229 = vld [vmem:[%s167 + $0xc8] sm:$0xff]
        %v230 = vld [vmem:[%s167 + $0xd0] sm:$0xff]
        %v231 = vld [vmem:[%s167 + $0xd8] sm:$0xff]
        %v232 = vld [vmem:[%s167 + $0xe0] sm:$0xff]
        %v233 = vld [vmem:[%s167 + $0xe8] sm:$0xff]
        %v234 = vld [vmem:[%s167 + $0xf0] sm:$0xff]
        %v235 = vld [vmem:[%s167 + $0xf8] sm:$0xff]
        %v236 = vld [vmem:[%s167 + $0x100] sm:$0xff]
        %v237 = vld [vmem:[%s167 + $0x108] sm:$0xff]
        %v238 = vld [vmem:[%s167 + $0x110] sm:$0xff]
        %v239 = vld [vmem:[%s167 + $0x118] sm:$0xff]
        %v240 = vld [vmem:[%s167 + $0x120] sm:$0xff]
        %v241 = vld [vmem:[%s167 + $0x128] sm:$0xff]
        %v242 = vld [vmem:[%s167 + $0x130] sm:$0xff]
        %v243 = vld [vmem:[%s167 + $0x138] sm:$0xff]
        %v244 = vld [vmem:[%s167 + $0x140] sm:$0xff]
        %v245 = vld [vmem:[%s167 + $0x148] sm:$0xff]
        %v246 = vld [vmem:[%s167 + $0x150] sm:$0xff]
        %v247 = vld [vmem:[%s167 + $0x158] sm:$0xff]
        %v248 = vld [vmem:[%s167 + $0x160] sm:$0xff]
        %v249 = vld [vmem:[%s167 + $0x168] sm:$0xff]
        %v250 = vld [vmem:[%s167 + $0x170] sm:$0xff]
        %v251 = vld [vmem:[%s167 + $0x178] sm:$0xff]
        %v252 = vld [vmem:[%s167 + $0x180] sm:$0xff]
        %v253 = vld [vmem:[%s167 + $0x188] sm:$0xff]
        %v254 = vld [vmem:[%s167 + $0x190] sm:$0xff]
        %v255 = vld [vmem:[%s167 + $0x198] sm:$0xff]
        %v256 = vld [vmem:[%s167 + $0x1a0] sm:$0xff]
        %v257 = vld [vmem:[%s167 + $0x1a8] sm:$0xff]
        %v258 = vld [vmem:[%s167 + $0x1b0] sm:$0xff]
        %v259 = vld [vmem:[%s167 + $0x1b8] sm:$0xff]
        %v260 = vld [vmem:[%s167 + $0x1c0] sm:$0xff]
        %v261 = vld [vmem:[%s167 + $0x1c8] sm:$0xff]
        %v262 = vld [vmem:[%s167 + $0x1d0] sm:$0xff]
        %v263 = vld [vmem:[%s167 + $0x1d8] sm:$0xff]
        %v264 = vld [vmem:[%s167 + $0x1e0] sm:$0xff]
        %v265 = vld [vmem:[%s167 + $0x1e8] sm:$0xff]
        %v266 = vld [vmem:[%s167 + $0x1f0] sm:$0xff]
        %v267 = vld [vmem:[%s167 + $0x1f8] sm:$0xff]
        %v268 = vld [vmem:[%s167 + $0x200] sm:$0xff]
        %v269 = vld [vmem:[%s167 + $0x208] sm:$0xff]
        %v270 = vld [vmem:[%s167 + $0x210] sm:$0xff]
        %v271 = vld [vmem:[%s167 + $0x218] sm:$0xff]
        %v272 = vld [vmem:[%s167 + $0x220] sm:$0xff]
        %v273 = vld [vmem:[%s167 + $0x228] sm:$0xff]
        %v274 = vld [vmem:[%s167 + $0x230] sm:$0xff]
        %v275 = vld [vmem:[%s167 + $0x238] sm:$0xff]
        %v276 = vld [vmem:[%s167 + $0x240] sm:$0xff]
        %v277 = vld [vmem:[%s167 + $0x248] sm:$0xff]
        %v278 = vld [vmem:[%s167 + $0x250] sm:$0xff]
        %v279 = vld [vmem:[%s167 + $0x258] sm:$0xff]
        %v280 = vld [vmem:[%s167 + $0x260] sm:$0xff]
        %v281 = vld [vmem:[%s167 + $0x268] sm:$0xff]
        %v282 = vld [vmem:[%s167 + $0x270] sm:$0xff]
        %v283 = vld [vmem:[%s167 + $0x278] sm:$0xff]
        %v284 = vld [vmem:[%s167 + $0x280] sm:$0xff]
        %v285 = vld [vmem:[%s167 + $0x288] sm:$0xff]
        %v286 = vld [vmem:[%s167 + $0x290] sm:$0xff]
        %v287 = vld [vmem:[%s167 + $0x298] sm:$0xff]
        %v288 = vld [vmem:[%s167 + $0x2a0] sm:$0xff]
        %v289 = vld [vmem:[%s167 + $0x2a8] sm:$0xff]
        %v290 = vld [vmem:[%s167 + $0x2b0] sm:$0xff]
        %v291 = vld [vmem:[%s167 + $0x2b8] sm:$0xff]
        %v292 = vld [vmem:[%s167 + $0x2c0] sm:$0xff]
        %v293 = vld [vmem:[%s167 + $0x2c8] sm:$0xff]
        %v294 = vld [vmem:[%s167 + $0x2d0] sm:$0xff]
        %v295 = vld [vmem:[%s167 + $0x2d8] sm:$0xff]
        %v296 = vld [vmem:[%s167 + $0x2e0] sm:$0xff]
        %v297 = vld [vmem:[%s167 + $0x2e8] sm:$0xff]
        %v298 = vld [vmem:[%s167 + $0x2f0] sm:$0xff]
        %v299 = vld [vmem:[%s167 + $0x2f8] sm:$0xff]
        %v300 = vld [vmem:[%s176] sm:$0xff]
        %v301 = vld [vmem:[%s176 + $0x8] sm:$0xff]
        %v302 = vld [vmem:[%s176 + $0x10] sm:$0xff]
        %v303 = vld [vmem:[%s176 + $0x18] sm:$0xff]
        %v304 = vld [vmem:[%s176 + $0x20] sm:$0xff]
        %v305 = vld [vmem:[%s176 + $0x28] sm:$0xff]
        %v306 = vld [vmem:[%s176 + $0x30] sm:$0xff]
        %v307 = vld [vmem:[%s176 + $0x38] sm:$0xff]
        %v308 = vld [vmem:[%s176 + $0x40] sm:$0xff]
        %v309 = vld [vmem:[%s176 + $0x48] sm:$0xff]
        %v310 = vld [vmem:[%s176 + $0x50] sm:$0xff]
        %v311 = vld [vmem:[%s176 + $0x58] sm:$0xff]
        %v312 = vld [vmem:[%s176 + $0x60] sm:$0xff]
        %v313 = vld [vmem:[%s176 + $0x68] sm:$0xff]
        %v314 = vld [vmem:[%s176 + $0x70] sm:$0xff]
        %v315 = vld [vmem:[%s176 + $0x78] sm:$0xff]
        %v316 = vld [vmem:[%s176 + $0x80] sm:$0xff]
        %v317 = vld [vmem:[%s176 + $0x88] sm:$0xff]
        %v318 = vld [vmem:[%s176 + $0x90] sm:$0xff]
        %v319 = vld [vmem:[%s176 + $0x98] sm:$0xff]
        %v320 = vld [vmem:[%s176 + $0xa0] sm:$0xff]
        %v321 = vld [vmem:[%s176 + $0xa8] sm:$0xff]
        %v322 = vld [vmem:[%s176 + $0xb0] sm:$0xff]
        %v323 = vld [vmem:[%s176 + $0xb8] sm:$0xff]
        %v324 = vld [vmem:[%s176 + $0xc0] sm:$0xff]
        %v325 = vld [vmem:[%s176 + $0xc8] sm:$0xff]
        %v326 = vld [vmem:[%s176 + $0xd0] sm:$0xff]
        %v327 = vld [vmem:[%s176 + $0xd8] sm:$0xff]
        %v328 = vld [vmem:[%s176 + $0xe0] sm:$0xff]
        %v329 = vld [vmem:[%s176 + $0xe8] sm:$0xff]
        %v330 = vld [vmem:[%s176 + $0xf0] sm:$0xff]
        %v331 = vld [vmem:[%s176 + $0xf8] sm:$0xff]
        %v332 = vld [vmem:[%s176 + $0x100] sm:$0xff]
        %v333 = vld [vmem:[%s176 + $0x108] sm:$0xff]
        %v334 = vld [vmem:[%s176 + $0x110] sm:$0xff]
        %v335 = vld [vmem:[%s176 + $0x118] sm:$0xff]
        %v336 = vld [vmem:[%s176 + $0x120] sm:$0xff]
        %v337 = vld [vmem:[%s176 + $0x128] sm:$0xff]
        %v338 = vld [vmem:[%s176 + $0x130] sm:$0xff]
        %v339 = vld [vmem:[%s176 + $0x138] sm:$0xff]
        %v340 = vld [vmem:[%s176 + $0x140] sm:$0xff]
        %v341 = vld [vmem:[%s176 + $0x148] sm:$0xff]
        %v342 = vld [vmem:[%s176 + $0x150] sm:$0xff]
        %v343 = vld [vmem:[%s176 + $0x158] sm:$0xff]
        %v344 = vld [vmem:[%s176 + $0x160] sm:$0xff]
        %v345 = vld [vmem:[%s176 + $0x168] sm:$0xff]
        %v346 = vld [vmem:[%s176 + $0x170] sm:$0xff]
        %v347 = vld [vmem:[%s176 + $0x178] sm:$0xff]
        %v348 = vld [vmem:[%s176 + $0x180] sm:$0xff]
        %v349 = vld [vmem:[%s176 + $0x188] sm:$0xff]
        %v350 = vld [vmem:[%s176 + $0x190] sm:$0xff]
        %v351 = vld [vmem:[%s176 + $0x198] sm:$0xff]
        %v352 = vld [vmem:[%s176 + $0x1a0] sm:$0xff]
        %v353 = vld [vmem:[%s176 + $0x1a8] sm:$0xff]
        %v354 = vld [vmem:[%s176 + $0x1b0] sm:$0xff]
        %v355 = vld [vmem:[%s176 + $0x1b8] sm:$0xff]
        %v356 = vld [vmem:[%s176 + $0x1c0] sm:$0xff]
        %v357 = vld [vmem:[%s176 + $0x1c8] sm:$0xff]
        %v358 = vld [vmem:[%s176 + $0x1d0] sm:$0xff]
        %v359 = vld [vmem:[%s176 + $0x1d8] sm:$0xff]
        %v360 = vld [vmem:[%s176 + $0x1e0] sm:$0xff]
        %v361 = vld [vmem:[%s176 + $0x1e8] sm:$0xff]
        %v362 = vld [vmem:[%s176 + $0x1f0] sm:$0xff]
        %v363 = vld [vmem:[%s176 + $0x1f8] sm:$0xff]
        %v364 = vld [vmem:[%s176 + $0x200] sm:$0xff]
        %v365 = vld [vmem:[%s176 + $0x208] sm:$0xff]
        %v366 = vld [vmem:[%s176 + $0x210] sm:$0xff]
        %v367 = vld [vmem:[%s176 + $0x218] sm:$0xff]
        %v368 = vld [vmem:[%s176 + $0x220] sm:$0xff]
        %v369 = vld [vmem:[%s176 + $0x228] sm:$0xff]
        %v370 = vld [vmem:[%s176 + $0x230] sm:$0xff]
        %v371 = vld [vmem:[%s176 + $0x238] sm:$0xff]
        %v372 = vld [vmem:[%s176 + $0x240] sm:$0xff]
        %v373 = vld [vmem:[%s176 + $0x248] sm:$0xff]
        %v374 = vld [vmem:[%s176 + $0x250] sm:$0xff]
        %v375 = vld [vmem:[%s176 + $0x258] sm:$0xff]
        %v376 = vld [vmem:[%s176 + $0x260] sm:$0xff]
        %v377 = vld [vmem:[%s176 + $0x268] sm:$0xff]
        %v378 = vld [vmem:[%s176 + $0x270] sm:$0xff]
        %v379 = vld [vmem:[%s176 + $0x278] sm:$0xff]
        %v380 = vld [vmem:[%s176 + $0x280] sm:$0xff]
        %v381 = vld [vmem:[%s176 + $0x288] sm:$0xff]
        %v382 = vld [vmem:[%s176 + $0x290] sm:$0xff]
        %v383 = vld [vmem:[%s176 + $0x298] sm:$0xff]
        %v384 = vld [vmem:[%s176 + $0x2a0] sm:$0xff]
        %v385 = vld [vmem:[%s176 + $0x2a8] sm:$0xff]
        %v386 = vld [vmem:[%s176 + $0x2b0] sm:$0xff]
        %v387 = vld [vmem:[%s176 + $0x2b8] sm:$0xff]
        %v388 = vld [vmem:[%s176 + $0x2c0] sm:$0xff]
        %v389 = vld [vmem:[%s176 + $0x2c8] sm:$0xff]
        %v390 = vld [vmem:[%s176 + $0x2d0] sm:$0xff]
        %v391 = vld [vmem:[%s176 + $0x2d8] sm:$0xff]
        %v392 = vld [vmem:[%s176 + $0x2e0] sm:$0xff]
        %v393 = vld [vmem:[%s176 + $0x2e8] sm:$0xff]
        %v394 = vld [vmem:[%s176 + $0x2f0] sm:$0xff]
        %v395 = vld [vmem:[%s176 + $0x2f8] sm:$0xff]
        %v396 = vsub.f32 %v204, %v300
        %v397 = vsub.f32 %v205, %v301
        %v398 = vsub.f32 %v206, %v302
        %v399 = vsub.f32 %v207, %v303
        %v400 = vsub.f32 %v208, %v304
        %v401 = vsub.f32 %v209, %v305
        %v402 = vsub.f32 %v210, %v306
        %v403 = vsub.f32 %v211, %v307
        %v404 = vsub.f32 %v212, %v308
        %v405 = vsub.f32 %v213, %v309
        %v406 = vsub.f32 %v214, %v310
        %v407 = vsub.f32 %v215, %v311
        %v408 = vsub.f32 %v216, %v312
        %v409 = vsub.f32 %v217, %v313
        %v410 = vsub.f32 %v218, %v314
        %v411 = vsub.f32 %v219, %v315
        %v412 = vsub.f32 %v220, %v316
        %v413 = vsub.f32 %v221, %v317
        %v414 = vsub.f32 %v222, %v318
        %v415 = vsub.f32 %v223, %v319
        %v416 = vsub.f32 %v224, %v320
        %v417 = vsub.f32 %v225, %v321
        %v418 = vsub.f32 %v226, %v322
        %v419 = vsub.f32 %v227, %v323
        %v420 = vsub.f32 %v228, %v324
        %v421 = vsub.f32 %v229, %v325
        %v422 = vsub.f32 %v230, %v326
        %v423 = vsub.f32 %v231, %v327
        %v424 = vsub.f32 %v232, %v328
        %v425 = vsub.f32 %v233, %v329
        %v426 = vsub.f32 %v234, %v330
        %v427 = vsub.f32 %v235, %v331
        %v428 = vsub.f32 %v236, %v332
        %v429 = vsub.f32 %v237, %v333
        %v430 = vsub.f32 %v238, %v334
        %v431 = vsub.f32 %v239, %v335
        %v432 = vsub.f32 %v240, %v336
        %v433 = vsub.f32 %v241, %v337
        %v434 = vsub.f32 %v242, %v338
        %v435 = vsub.f32 %v243, %v339
        %v436 = vsub.f32 %v244, %v340
        %v437 = vsub.f32 %v245, %v341
        %v438 = vsub.f32 %v246, %v342
        %v439 = vsub.f32 %v247, %v343
        %v440 = vsub.f32 %v248, %v344
        %v441 = vsub.f32 %v249, %v345
        %v442 = vsub.f32 %v250, %v346
        %v443 = vsub.f32 %v251, %v347
        %v444 = vsub.f32 %v252, %v348
        %v445 = vsub.f32 %v253, %v349
        %v446 = vsub.f32 %v254, %v350
        %v447 = vsub.f32 %v255, %v351
        %v448 = vsub.f32 %v256, %v352
        %v449 = vsub.f32 %v257, %v353
        %v450 = vsub.f32 %v258, %v354
        %v451 = vsub.f32 %v259, %v355
        %v452 = vsub.f32 %v260, %v356
        %v453 = vsub.f32 %v261, %v357
        %v454 = vsub.f32 %v262, %v358
        %v455 = vsub.f32 %v263, %v359
        %v456 = vsub.f32 %v264, %v360
        %v457 = vsub.f32 %v265, %v361
        %v458 = vsub.f32 %v266, %v362
        %v459 = vsub.f32 %v267, %v363
        %v460 = vsub.f32 %v268, %v364
        %v461 = vsub.f32 %v269, %v365
        %v462 = vsub.f32 %v270, %v366
        %v463 = vsub.f32 %v271, %v367
        %v464 = vsub.f32 %v272, %v368
        %v465 = vsub.f32 %v273, %v369
        %v466 = vsub.f32 %v274, %v370
        %v467 = vsub.f32 %v275, %v371
        %v468 = vsub.f32 %v276, %v372
        %v469 = vsub.f32 %v277, %v373
        %v470 = vsub.f32 %v278, %v374
        %v471 = vsub.f32 %v279, %v375
        %v472 = vsub.f32 %v280, %v376
        %v473 = vsub.f32 %v281, %v377
        %v474 = vsub.f32 %v282, %v378
        %v475 = vsub.f32 %v283, %v379
        %v476 = vsub.f32 %v284, %v380
        %v477 = vsub.f32 %v285, %v381
        %v478 = vsub.f32 %v286, %v382
        %v479 = vsub.f32 %v287, %v383
        %v480 = vsub.f32 %v288, %v384
        %v481 = vsub.f32 %v289, %v385
        %v482 = vsub.f32 %v290, %v386
        %v483 = vsub.f32 %v291, %v387
        %v484 = vsub.f32 %v292, %v388
        %v485 = vsub.f32 %v293, %v389
        %v486 = vsub.f32 %v294, %v390
        %v487 = vsub.f32 %v295, %v391
        %v488 = vsub.f32 %v296, %v392
        %v489 = vsub.f32 %v297, %v393
        %v490 = vsub.f32 %v298, %v394
        %v491 = vsub.f32 %v299, %v395
        %v492 = vmul.f32 %v396, %v396
        %v493 = vmul.f32 %v397, %v397
        %v494 = vmul.f32 %v398, %v398
        %v495 = vmul.f32 %v399, %v399
        %v496 = vmul.f32 %v400, %v400
        %v497 = vmul.f32 %v401, %v401
        %v498 = vmul.f32 %v402, %v402
        %v499 = vmul.f32 %v403, %v403
        %v500 = vmul.f32 %v404, %v404
        %v501 = vmul.f32 %v405, %v405
        %v502 = vmul.f32 %v406, %v406
        %v503 = vmul.f32 %v407, %v407
        %v504 = vmul.f32 %v408, %v408
        %v505 = vmul.f32 %v409, %v409
        %v506 = vmul.f32 %v410, %v410
        %v507 = vmul.f32 %v411, %v411
        %v508 = vmul.f32 %v412, %v412
        %v509 = vmul.f32 %v413, %v413
        %v510 = vmul.f32 %v414, %v414
        %v511 = vmul.f32 %v415, %v415
        %v512 = vmul.f32 %v416, %v416
        %v513 = vmul.f32 %v417, %v417
        %v514 = vmul.f32 %v418, %v418
        %v515 = vmul.f32 %v419, %v419
        %v516 = vmul.f32 %v420, %v420
        %v517 = vmul.f32 %v421, %v421
        %v518 = vmul.f32 %v422, %v422
        %v519 = vmul.f32 %v423, %v423
        %v520 = vmul.f32 %v424, %v424
        %v521 = vmul.f32 %v425, %v425
        %v522 = vmul.f32 %v426, %v426
        %v523 = vmul.f32 %v427, %v427
        %v524 = vmul.f32 %v428, %v428
        %v525 = vmul.f32 %v429, %v429
        %v526 = vmul.f32 %v430, %v430
        %v527 = vmul.f32 %v431, %v431
        %v528 = vmul.f32 %v432, %v432
        %v529 = vmul.f32 %v433, %v433
        %v530 = vmul.f32 %v434, %v434
        %v531 = vmul.f32 %v435, %v435
        %v532 = vmul.f32 %v436, %v436
        %v533 = vmul.f32 %v437, %v437
        %v534 = vmul.f32 %v438, %v438
        %v535 = vmul.f32 %v439, %v439
        %v536 = vmul.f32 %v440, %v440
        %v537 = vmul.f32 %v441, %v441
        %v538 = vmul.f32 %v442, %v442
        %v539 = vmul.f32 %v443, %v443
        %v540 = vmul.f32 %v444, %v444
        %v541 = vmul.f32 %v445, %v445
        %v542 = vmul.f32 %v446, %v446
        %v543 = vmul.f32 %v447, %v447
        %v544 = vmul.f32 %v448, %v448
        %v545 = vmul.f32 %v449, %v449
        %v546 = vmul.f32 %v450, %v450
        %v547 = vmul.f32 %v451, %v451
        %v548 = vmul.f32 %v452, %v452
        %v549 = vmul.f32 %v453, %v453
        %v550 = vmul.f32 %v454, %v454
        %v551 = vmul.f32 %v455, %v455
        %v552 = vmul.f32 %v456, %v456
        %v553 = vmul.f32 %v457, %v457
        %v554 = vmul.f32 %v458, %v458
        %v555 = vmul.f32 %v459, %v459
        %v556 = vmul.f32 %v460, %v460
        %v557 = vmul.f32 %v461, %v461
        %v558 = vmul.f32 %v462, %v462
        %v559 = vmul.f32 %v463, %v463
        %v560 = vmul.f32 %v464, %v464
        %v561 = vmul.f32 %v465, %v465
        %v562 = vmul.f32 %v466, %v466
        %v563 = vmul.f32 %v467, %v467
        %v564 = vmul.f32 %v468, %v468
        %v565 = vmul.f32 %v469, %v469
        %v566 = vmul.f32 %v470, %v470
        %v567 = vmul.f32 %v471, %v471
        %v568 = vmul.f32 %v472, %v472
        %v569 = vmul.f32 %v473, %v473
        %v570 = vmul.f32 %v474, %v474
        %v571 = vmul.f32 %v475, %v475
        %v572 = vmul.f32 %v476, %v476
        %v573 = vmul.f32 %v477, %v477
        %v574 = vmul.f32 %v478, %v478
        %v575 = vmul.f32 %v479, %v479
        %v576 = vmul.f32 %v480, %v480
        %v577 = vmul.f32 %v481, %v481
        %v578 = vmul.f32 %v482, %v482
        %v579 = vmul.f32 %v483, %v483
        %v580 = vmul.f32 %v484, %v484
        %v581 = vmul.f32 %v485, %v485
        %v582 = vmul.f32 %v486, %v486
        %v583 = vmul.f32 %v487, %v487
        %v584 = vmul.f32 %v488, %v488
        %v585 = vmul.f32 %v489, %v489
        %v586 = vmul.f32 %v490, %v490
        %v587 = vmul.f32 %v491, %v491
        %v588 = vadd.f32 %v492, 1e-06
        %v589 = vadd.f32 %v493, 1e-06
        %v590 = vadd.f32 %v494, 1e-06
        %v591 = vadd.f32 %v495, 1e-06
        %v592 = vadd.f32 %v496, 1e-06
        %v593 = vadd.f32 %v497, 1e-06
        %v594 = vadd.f32 %v498, 1e-06
        %v595 = vadd.f32 %v499, 1e-06
        %v596 = vadd.f32 %v500, 1e-06
        %v597 = vadd.f32 %v501, 1e-06
        %v598 = vadd.f32 %v502, 1e-06
        %v599 = vadd.f32 %v503, 1e-06
        %v600 = vadd.f32 %v504, 1e-06
        %v601 = vadd.f32 %v505, 1e-06
        %v602 = vadd.f32 %v506, 1e-06
        %v603 = vadd.f32 %v507, 1e-06
        %v604 = vadd.f32 %v508, 1e-06
        %v605 = vadd.f32 %v509, 1e-06
        %v606 = vadd.f32 %v510, 1e-06
        %v607 = vadd.f32 %v511, 1e-06
        %v608 = vadd.f32 %v512, 1e-06
        %v609 = vadd.f32 %v513, 1e-06
        %v610 = vadd.f32 %v514, 1e-06
        %v611 = vadd.f32 %v515, 1e-06
        %v612 = vadd.f32 %v516, 1e-06
        %v613 = vadd.f32 %v517, 1e-06
        %v614 = vadd.f32 %v518, 1e-06
        %v615 = vadd.f32 %v519, 1e-06
        %v616 = vadd.f32 %v520, 1e-06
        %v617 = vadd.f32 %v521, 1e-06
        %v618 = vadd.f32 %v522, 1e-06
        %v619 = vadd.f32 %v523, 1e-06
        %v620 = vadd.f32 %v524, 1e-06
        %v621 = vadd.f32 %v525, 1e-06
        %v622 = vadd.f32 %v526, 1e-06
        %v623 = vadd.f32 %v527, 1e-06
        %v624 = vadd.f32 %v528, 1e-06
        %v625 = vadd.f32 %v529, 1e-06
        %v626 = vadd.f32 %v530, 1e-06
        %v627 = vadd.f32 %v531, 1e-06
        %v628 = vadd.f32 %v532, 1e-06
        %v629 = vadd.f32 %v533, 1e-06
        %v630 = vadd.f32 %v534, 1e-06
        %v631 = vadd.f32 %v535, 1e-06
        %v632 = vadd.f32 %v536, 1e-06
        %v633 = vadd.f32 %v537, 1e-06
        %v634 = vadd.f32 %v538, 1e-06
        %v635 = vadd.f32 %v539, 1e-06
        %v636 = vadd.f32 %v540, 1e-06
        %v637 = vadd.f32 %v541, 1e-06
        %v638 = vadd.f32 %v542, 1e-06
        %v639 = vadd.f32 %v543, 1e-06
        %v640 = vadd.f32 %v544, 1e-06
        %v641 = vadd.f32 %v545, 1e-06
        %v642 = vadd.f32 %v546, 1e-06
        %v643 = vadd.f32 %v547, 1e-06
        %v644 = vadd.f32 %v548, 1e-06
        %v645 = vadd.f32 %v549, 1e-06
        %v646 = vadd.f32 %v550, 1e-06
        %v647 = vadd.f32 %v551, 1e-06
        %v648 = vadd.f32 %v552, 1e-06
        %v649 = vadd.f32 %v553, 1e-06
        %v650 = vadd.f32 %v554, 1e-06
        %v651 = vadd.f32 %v555, 1e-06
        %v652 = vadd.f32 %v556, 1e-06
        %v653 = vadd.f32 %v557, 1e-06
        %v654 = vadd.f32 %v558, 1e-06
        %v655 = vadd.f32 %v559, 1e-06
        %v656 = vadd.f32 %v560, 1e-06
        %v657 = vadd.f32 %v561, 1e-06
        %v658 = vadd.f32 %v562, 1e-06
        %v659 = vadd.f32 %v563, 1e-06
        %v660 = vadd.f32 %v564, 1e-06
        %v661 = vadd.f32 %v565, 1e-06
        %v662 = vadd.f32 %v566, 1e-06
        %v663 = vadd.f32 %v567, 1e-06
        %v664 = vadd.f32 %v568, 1e-06
        %v665 = vadd.f32 %v569, 1e-06
        %v666 = vadd.f32 %v570, 1e-06
        %v667 = vadd.f32 %v571, 1e-06
        %v668 = vadd.f32 %v572, 1e-06
        %v669 = vadd.f32 %v573, 1e-06
        %v670 = vadd.f32 %v574, 1e-06
        %v671 = vadd.f32 %v575, 1e-06
        %v672 = vadd.f32 %v576, 1e-06
        %v673 = vadd.f32 %v577, 1e-06
        %v674 = vadd.f32 %v578, 1e-06
        %v675 = vadd.f32 %v579, 1e-06
        %v676 = vadd.f32 %v580, 1e-06
        %v677 = vadd.f32 %v581, 1e-06
        %v678 = vadd.f32 %v582, 1e-06
        %v679 = vadd.f32 %v583, 1e-06
        %v680 = vadd.f32 %v584, 1e-06
        %v681 = vadd.f32 %v585, 1e-06
        %v682 = vadd.f32 %v586, 1e-06
        %v683 = vadd.f32 %v587, 1e-06
        %v684 = vrsqrt.pop %v588
        %v685 = vmul.f32 %v588, %v684
        %vm686 = vcmp.eq.f32.partialorder %v588, inf
        %v687 = vsel %vm686, %v588, %v685
        %vm688 = vcmp.eq.f32.partialorder %v588, 0.0
        %v689 = vand.u32 %v588, 2147483648
        %v690 = vsel %vm688, %v689, %v687
        %v691 = vrsqrt.pop %v589
        %v692 = vmul.f32 %v589, %v691
        %vm693 = vcmp.eq.f32.partialorder %v589, inf
        %v694 = vsel %vm693, %v589, %v692
        %vm695 = vcmp.eq.f32.partialorder %v589, 0.0
        %v696 = vand.u32 %v589, 2147483648
        %v697 = vsel %vm695, %v696, %v694
        %v698 = vrsqrt.pop %v590
        %v699 = vmul.f32 %v590, %v698
        %vm700 = vcmp.eq.f32.partialorder %v590, inf
        %v701 = vsel %vm700, %v590, %v699
        %vm702 = vcmp.eq.f32.partialorder %v590, 0.0
        %v703 = vand.u32 %v590, 2147483648
        %v704 = vsel %vm702, %v703, %v701
        %v705 = vrsqrt.pop %v591
        %v706 = vmul.f32 %v591, %v705
        %vm707 = vcmp.eq.f32.partialorder %v591, inf
        %v708 = vsel %vm707, %v591, %v706
        %vm709 = vcmp.eq.f32.partialorder %v591, 0.0
        %v710 = vand.u32 %v591, 2147483648
        %v711 = vsel %vm709, %v710, %v708
        %v712 = vrsqrt.pop %v592
        %v713 = vmul.f32 %v592, %v712
        %vm714 = vcmp.eq.f32.partialorder %v592, inf
        %v715 = vsel %vm714, %v592, %v713
        %vm716 = vcmp.eq.f32.partialorder %v592, 0.0
        %v717 = vand.u32 %v592, 2147483648
        %v718 = vsel %vm716, %v717, %v715
        %v719 = vrsqrt.pop %v593
        %v720 = vmul.f32 %v593, %v719
        %vm721 = vcmp.eq.f32.partialorder %v593, inf
        %v722 = vsel %vm721, %v593, %v720
        %vm723 = vcmp.eq.f32.partialorder %v593, 0.0
        %v724 = vand.u32 %v593, 2147483648
        %v725 = vsel %vm723, %v724, %v722
        %v726 = vrsqrt.pop %v594
        %v727 = vmul.f32 %v594, %v726
        %vm728 = vcmp.eq.f32.partialorder %v594, inf
        %v729 = vsel %vm728, %v594, %v727
        %vm730 = vcmp.eq.f32.partialorder %v594, 0.0
        %v731 = vand.u32 %v594, 2147483648
        %v732 = vsel %vm730, %v731, %v729
        %v733 = vrsqrt.pop %v595
        %v734 = vmul.f32 %v595, %v733
        %vm735 = vcmp.eq.f32.partialorder %v595, inf
        %v736 = vsel %vm735, %v595, %v734
        %vm737 = vcmp.eq.f32.partialorder %v595, 0.0
        %v738 = vand.u32 %v595, 2147483648
        %v739 = vsel %vm737, %v738, %v736
        %v740 = vrsqrt.pop %v596
        %v741 = vmul.f32 %v596, %v740
        %vm742 = vcmp.eq.f32.partialorder %v596, inf
        %v743 = vsel %vm742, %v596, %v741
        %vm744 = vcmp.eq.f32.partialorder %v596, 0.0
        %v745 = vand.u32 %v596, 2147483648
        %v746 = vsel %vm744, %v745, %v743
        %v747 = vrsqrt.pop %v597
        %v748 = vmul.f32 %v597, %v747
        %vm749 = vcmp.eq.f32.partialorder %v597, inf
        %v750 = vsel %vm749, %v597, %v748
        %vm751 = vcmp.eq.f32.partialorder %v597, 0.0
        %v752 = vand.u32 %v597, 2147483648
        %v753 = vsel %vm751, %v752, %v750
        %v754 = vrsqrt.pop %v598
        %v755 = vmul.f32 %v598, %v754
        %vm756 = vcmp.eq.f32.partialorder %v598, inf
        %v757 = vsel %vm756, %v598, %v755
        %vm758 = vcmp.eq.f32.partialorder %v598, 0.0
        %v759 = vand.u32 %v598, 2147483648
        %v760 = vsel %vm758, %v759, %v757
        %v761 = vrsqrt.pop %v599
        %v762 = vmul.f32 %v599, %v761
        %vm763 = vcmp.eq.f32.partialorder %v599, inf
        %v764 = vsel %vm763, %v599, %v762
        %vm765 = vcmp.eq.f32.partialorder %v599, 0.0
        %v766 = vand.u32 %v599, 2147483648
        %v767 = vsel %vm765, %v766, %v764
        %v768 = vrsqrt.pop %v600
        %v769 = vmul.f32 %v600, %v768
        %vm770 = vcmp.eq.f32.partialorder %v600, inf
        %v771 = vsel %vm770, %v600, %v769
        %vm772 = vcmp.eq.f32.partialorder %v600, 0.0
        %v773 = vand.u32 %v600, 2147483648
        %v774 = vsel %vm772, %v773, %v771
        %v775 = vrsqrt.pop %v601
        %v776 = vmul.f32 %v601, %v775
        %vm777 = vcmp.eq.f32.partialorder %v601, inf
        %v778 = vsel %vm777, %v601, %v776
        %vm779 = vcmp.eq.f32.partialorder %v601, 0.0
        %v780 = vand.u32 %v601, 2147483648
        %v781 = vsel %vm779, %v780, %v778
        %v782 = vrsqrt.pop %v602
        %v783 = vmul.f32 %v602, %v782
        %vm784 = vcmp.eq.f32.partialorder %v602, inf
        %v785 = vsel %vm784, %v602, %v783
        %vm786 = vcmp.eq.f32.partialorder %v602, 0.0
        %v787 = vand.u32 %v602, 2147483648
        %v788 = vsel %vm786, %v787, %v785
        %v789 = vrsqrt.pop %v603
        %v790 = vmul.f32 %v603, %v789
        %vm791 = vcmp.eq.f32.partialorder %v603, inf
        %v792 = vsel %vm791, %v603, %v790
        %vm793 = vcmp.eq.f32.partialorder %v603, 0.0
        %v794 = vand.u32 %v603, 2147483648
        %v795 = vsel %vm793, %v794, %v792
        %v796 = vrsqrt.pop %v604
        %v797 = vmul.f32 %v604, %v796
        %vm798 = vcmp.eq.f32.partialorder %v604, inf
        %v799 = vsel %vm798, %v604, %v797
        %vm800 = vcmp.eq.f32.partialorder %v604, 0.0
        %v801 = vand.u32 %v604, 2147483648
        %v802 = vsel %vm800, %v801, %v799
        %v803 = vrsqrt.pop %v605
        %v804 = vmul.f32 %v605, %v803
        %vm805 = vcmp.eq.f32.partialorder %v605, inf
        %v806 = vsel %vm805, %v605, %v804
        %vm807 = vcmp.eq.f32.partialorder %v605, 0.0
        %v808 = vand.u32 %v605, 2147483648
        %v809 = vsel %vm807, %v808, %v806
        %v810 = vrsqrt.pop %v606
        %v811 = vmul.f32 %v606, %v810
        %vm812 = vcmp.eq.f32.partialorder %v606, inf
        %v813 = vsel %vm812, %v606, %v811
        %vm814 = vcmp.eq.f32.partialorder %v606, 0.0
        %v815 = vand.u32 %v606, 2147483648
        %v816 = vsel %vm814, %v815, %v813
        %v817 = vrsqrt.pop %v607
        %v818 = vmul.f32 %v607, %v817
        %vm819 = vcmp.eq.f32.partialorder %v607, inf
        %v820 = vsel %vm819, %v607, %v818
        %vm821 = vcmp.eq.f32.partialorder %v607, 0.0
        %v822 = vand.u32 %v607, 2147483648
        %v823 = vsel %vm821, %v822, %v820
        %v824 = vrsqrt.pop %v608
        %v825 = vmul.f32 %v608, %v824
        %vm826 = vcmp.eq.f32.partialorder %v608, inf
        %v827 = vsel %vm826, %v608, %v825
        %vm828 = vcmp.eq.f32.partialorder %v608, 0.0
        %v829 = vand.u32 %v608, 2147483648
        %v830 = vsel %vm828, %v829, %v827
        %v831 = vrsqrt.pop %v609
        %v832 = vmul.f32 %v609, %v831
        %vm833 = vcmp.eq.f32.partialorder %v609, inf
        %v834 = vsel %vm833, %v609, %v832
        %vm835 = vcmp.eq.f32.partialorder %v609, 0.0
        %v836 = vand.u32 %v609, 2147483648
        %v837 = vsel %vm835, %v836, %v834
        %v838 = vrsqrt.pop %v610
        %v839 = vmul.f32 %v610, %v838
        %vm840 = vcmp.eq.f32.partialorder %v610, inf
        %v841 = vsel %vm840, %v610, %v839
        %vm842 = vcmp.eq.f32.partialorder %v610, 0.0
        %v843 = vand.u32 %v610, 2147483648
        %v844 = vsel %vm842, %v843, %v841
        %v845 = vrsqrt.pop %v611
        %v846 = vmul.f32 %v611, %v845
        %vm847 = vcmp.eq.f32.partialorder %v611, inf
        %v848 = vsel %vm847, %v611, %v846
        %vm849 = vcmp.eq.f32.partialorder %v611, 0.0
        %v850 = vand.u32 %v611, 2147483648
        %v851 = vsel %vm849, %v850, %v848
        %v852 = vrsqrt.pop %v612
        %v853 = vmul.f32 %v612, %v852
        %vm854 = vcmp.eq.f32.partialorder %v612, inf
        %v855 = vsel %vm854, %v612, %v853
        %vm856 = vcmp.eq.f32.partialorder %v612, 0.0
        %v857 = vand.u32 %v612, 2147483648
        %v858 = vsel %vm856, %v857, %v855
        %v859 = vrsqrt.pop %v613
        %v860 = vmul.f32 %v613, %v859
        %vm861 = vcmp.eq.f32.partialorder %v613, inf
        %v862 = vsel %vm861, %v613, %v860
        %vm863 = vcmp.eq.f32.partialorder %v613, 0.0
        %v864 = vand.u32 %v613, 2147483648
        %v865 = vsel %vm863, %v864, %v862
        %v866 = vrsqrt.pop %v614
        %v867 = vmul.f32 %v614, %v866
        %vm868 = vcmp.eq.f32.partialorder %v614, inf
        %v869 = vsel %vm868, %v614, %v867
        %vm870 = vcmp.eq.f32.partialorder %v614, 0.0
        %v871 = vand.u32 %v614, 2147483648
        %v872 = vsel %vm870, %v871, %v869
        %v873 = vrsqrt.pop %v615
        %v874 = vmul.f32 %v615, %v873
        %vm875 = vcmp.eq.f32.partialorder %v615, inf
        %v876 = vsel %vm875, %v615, %v874
        %vm877 = vcmp.eq.f32.partialorder %v615, 0.0
        %v878 = vand.u32 %v615, 2147483648
        %v879 = vsel %vm877, %v878, %v876
        %v880 = vrsqrt.pop %v616
        %v881 = vmul.f32 %v616, %v880
        %vm882 = vcmp.eq.f32.partialorder %v616, inf
        %v883 = vsel %vm882, %v616, %v881
        %vm884 = vcmp.eq.f32.partialorder %v616, 0.0
        %v885 = vand.u32 %v616, 2147483648
        %v886 = vsel %vm884, %v885, %v883
        %v887 = vrsqrt.pop %v617
        %v888 = vmul.f32 %v617, %v887
        %vm889 = vcmp.eq.f32.partialorder %v617, inf
        %v890 = vsel %vm889, %v617, %v888
        %vm891 = vcmp.eq.f32.partialorder %v617, 0.0
        %v892 = vand.u32 %v617, 2147483648
        %v893 = vsel %vm891, %v892, %v890
        %v894 = vrsqrt.pop %v618
        %v895 = vmul.f32 %v618, %v894
        %vm896 = vcmp.eq.f32.partialorder %v618, inf
        %v897 = vsel %vm896, %v618, %v895
        %vm898 = vcmp.eq.f32.partialorder %v618, 0.0
        %v899 = vand.u32 %v618, 2147483648
        %v900 = vsel %vm898, %v899, %v897
        %v901 = vrsqrt.pop %v619
        %v902 = vmul.f32 %v619, %v901
        %vm903 = vcmp.eq.f32.partialorder %v619, inf
        %v904 = vsel %vm903, %v619, %v902
        %vm905 = vcmp.eq.f32.partialorder %v619, 0.0
        %v906 = vand.u32 %v619, 2147483648
        %v907 = vsel %vm905, %v906, %v904
        %v908 = vrsqrt.pop %v620
        %v909 = vmul.f32 %v620, %v908
        %vm910 = vcmp.eq.f32.partialorder %v620, inf
        %v911 = vsel %vm910, %v620, %v909
        %vm912 = vcmp.eq.f32.partialorder %v620, 0.0
        %v913 = vand.u32 %v620, 2147483648
        %v914 = vsel %vm912, %v913, %v911
        %v915 = vrsqrt.pop %v621
        %v916 = vmul.f32 %v621, %v915
        %vm917 = vcmp.eq.f32.partialorder %v621, inf
        %v918 = vsel %vm917, %v621, %v916
        %vm919 = vcmp.eq.f32.partialorder %v621, 0.0
        %v920 = vand.u32 %v621, 2147483648
        %v921 = vsel %vm919, %v920, %v918
        %v922 = vrsqrt.pop %v622
        %v923 = vmul.f32 %v622, %v922
        %vm924 = vcmp.eq.f32.partialorder %v622, inf
        %v925 = vsel %vm924, %v622, %v923
        %vm926 = vcmp.eq.f32.partialorder %v622, 0.0
        %v927 = vand.u32 %v622, 2147483648
        %v928 = vsel %vm926, %v927, %v925
        %v929 = vrsqrt.pop %v623
        %v930 = vmul.f32 %v623, %v929
        %vm931 = vcmp.eq.f32.partialorder %v623, inf
        %v932 = vsel %vm931, %v623, %v930
        %vm933 = vcmp.eq.f32.partialorder %v623, 0.0
        %v934 = vand.u32 %v623, 2147483648
        %v935 = vsel %vm933, %v934, %v932
        %v936 = vrsqrt.pop %v624
        %v937 = vmul.f32 %v624, %v936
        %vm938 = vcmp.eq.f32.partialorder %v624, inf
        %v939 = vsel %vm938, %v624, %v937
        %vm940 = vcmp.eq.f32.partialorder %v624, 0.0
        %v941 = vand.u32 %v624, 2147483648
        %v942 = vsel %vm940, %v941, %v939
        %v943 = vrsqrt.pop %v625
        %v944 = vmul.f32 %v625, %v943
        %vm945 = vcmp.eq.f32.partialorder %v625, inf
        %v946 = vsel %vm945, %v625, %v944
        %vm947 = vcmp.eq.f32.partialorder %v625, 0.0
        %v948 = vand.u32 %v625, 2147483648
        %v949 = vsel %vm947, %v948, %v946
        %v950 = vrsqrt.pop %v626
        %v951 = vmul.f32 %v626, %v950
        %vm952 = vcmp.eq.f32.partialorder %v626, inf
        %v953 = vsel %vm952, %v626, %v951
        %vm954 = vcmp.eq.f32.partialorder %v626, 0.0
        %v955 = vand.u32 %v626, 2147483648
        %v956 = vsel %vm954, %v955, %v953
        %v957 = vrsqrt.pop %v627
        %v958 = vmul.f32 %v627, %v957
        %vm959 = vcmp.eq.f32.partialorder %v627, inf
        %v960 = vsel %vm959, %v627, %v958
        %vm961 = vcmp.eq.f32.partialorder %v627, 0.0
        %v962 = vand.u32 %v627, 2147483648
        %v963 = vsel %vm961, %v962, %v960
        %v964 = vrsqrt.pop %v628
        %v965 = vmul.f32 %v628, %v964
        %vm966 = vcmp.eq.f32.partialorder %v628, inf
        %v967 = vsel %vm966, %v628, %v965
        %vm968 = vcmp.eq.f32.partialorder %v628, 0.0
        %v969 = vand.u32 %v628, 2147483648
        %v970 = vsel %vm968, %v969, %v967
        %v971 = vrsqrt.pop %v629
        %v972 = vmul.f32 %v629, %v971
        %vm973 = vcmp.eq.f32.partialorder %v629, inf
        %v974 = vsel %vm973, %v629, %v972
        %vm975 = vcmp.eq.f32.partialorder %v629, 0.0
        %v976 = vand.u32 %v629, 2147483648
        %v977 = vsel %vm975, %v976, %v974
        %v978 = vrsqrt.pop %v630
        %v979 = vmul.f32 %v630, %v978
        %vm980 = vcmp.eq.f32.partialorder %v630, inf
        %v981 = vsel %vm980, %v630, %v979
        %vm982 = vcmp.eq.f32.partialorder %v630, 0.0
        %v983 = vand.u32 %v630, 2147483648
        %v984 = vsel %vm982, %v983, %v981
        %v985 = vrsqrt.pop %v631
        %v986 = vmul.f32 %v631, %v985
        %vm987 = vcmp.eq.f32.partialorder %v631, inf
        %v988 = vsel %vm987, %v631, %v986
        %vm989 = vcmp.eq.f32.partialorder %v631, 0.0
        %v990 = vand.u32 %v631, 2147483648
        %v991 = vsel %vm989, %v990, %v988
        %v992 = vrsqrt.pop %v632
        %v993 = vmul.f32 %v632, %v992
        %vm994 = vcmp.eq.f32.partialorder %v632, inf
        %v995 = vsel %vm994, %v632, %v993
        %vm996 = vcmp.eq.f32.partialorder %v632, 0.0
        %v997 = vand.u32 %v632, 2147483648
        %v998 = vsel %vm996, %v997, %v995
        %v999 = vrsqrt.pop %v633
        %v1000 = vmul.f32 %v633, %v999
        %vm1001 = vcmp.eq.f32.partialorder %v633, inf
        %v1002 = vsel %vm1001, %v633, %v1000
        %vm1003 = vcmp.eq.f32.partialorder %v633, 0.0
        %v1004 = vand.u32 %v633, 2147483648
        %v1005 = vsel %vm1003, %v1004, %v1002
        %v1006 = vrsqrt.pop %v634
        %v1007 = vmul.f32 %v634, %v1006
        %vm1008 = vcmp.eq.f32.partialorder %v634, inf
        %v1009 = vsel %vm1008, %v634, %v1007
        %vm1010 = vcmp.eq.f32.partialorder %v634, 0.0
        %v1011 = vand.u32 %v634, 2147483648
        %v1012 = vsel %vm1010, %v1011, %v1009
        %v1013 = vrsqrt.pop %v635
        %v1014 = vmul.f32 %v635, %v1013
        %vm1015 = vcmp.eq.f32.partialorder %v635, inf
        %v1016 = vsel %vm1015, %v635, %v1014
        %vm1017 = vcmp.eq.f32.partialorder %v635, 0.0
        %v1018 = vand.u32 %v635, 2147483648
        %v1019 = vsel %vm1017, %v1018, %v1016
        %v1020 = vrsqrt.pop %v636
        %v1021 = vmul.f32 %v636, %v1020
        %vm1022 = vcmp.eq.f32.partialorder %v636, inf
        %v1023 = vsel %vm1022, %v636, %v1021
        %vm1024 = vcmp.eq.f32.partialorder %v636, 0.0
        %v1025 = vand.u32 %v636, 2147483648
        %v1026 = vsel %vm1024, %v1025, %v1023
        %v1027 = vrsqrt.pop %v637
        %v1028 = vmul.f32 %v637, %v1027
        %vm1029 = vcmp.eq.f32.partialorder %v637, inf
        %v1030 = vsel %vm1029, %v637, %v1028
        %vm1031 = vcmp.eq.f32.partialorder %v637, 0.0
        %v1032 = vand.u32 %v637, 2147483648
        %v1033 = vsel %vm1031, %v1032, %v1030
        %v1034 = vrsqrt.pop %v638
        %v1035 = vmul.f32 %v638, %v1034
        %vm1036 = vcmp.eq.f32.partialorder %v638, inf
        %v1037 = vsel %vm1036, %v638, %v1035
        %vm1038 = vcmp.eq.f32.partialorder %v638, 0.0
        %v1039 = vand.u32 %v638, 2147483648
        %v1040 = vsel %vm1038, %v1039, %v1037
        %v1041 = vrsqrt.pop %v639
        %v1042 = vmul.f32 %v639, %v1041
        %vm1043 = vcmp.eq.f32.partialorder %v639, inf
        %v1044 = vsel %vm1043, %v639, %v1042
        %vm1045 = vcmp.eq.f32.partialorder %v639, 0.0
        %v1046 = vand.u32 %v639, 2147483648
        %v1047 = vsel %vm1045, %v1046, %v1044
        %v1048 = vrsqrt.pop %v640
        %v1049 = vmul.f32 %v640, %v1048
        %vm1050 = vcmp.eq.f32.partialorder %v640, inf
        %v1051 = vsel %vm1050, %v640, %v1049
        %vm1052 = vcmp.eq.f32.partialorder %v640, 0.0
        %v1053 = vand.u32 %v640, 2147483648
        %v1054 = vsel %vm1052, %v1053, %v1051
        %v1055 = vrsqrt.pop %v641
        %v1056 = vmul.f32 %v641, %v1055
        %vm1057 = vcmp.eq.f32.partialorder %v641, inf
        %v1058 = vsel %vm1057, %v641, %v1056
        %vm1059 = vcmp.eq.f32.partialorder %v641, 0.0
        %v1060 = vand.u32 %v641, 2147483648
        %v1061 = vsel %vm1059, %v1060, %v1058
        %v1062 = vrsqrt.pop %v642
        %v1063 = vmul.f32 %v642, %v1062
        %vm1064 = vcmp.eq.f32.partialorder %v642, inf
        %v1065 = vsel %vm1064, %v642, %v1063
        %vm1066 = vcmp.eq.f32.partialorder %v642, 0.0
        %v1067 = vand.u32 %v642, 2147483648
        %v1068 = vsel %vm1066, %v1067, %v1065
        %v1069 = vrsqrt.pop %v643
        %v1070 = vmul.f32 %v643, %v1069
        %vm1071 = vcmp.eq.f32.partialorder %v643, inf
        %v1072 = vsel %vm1071, %v643, %v1070
        %vm1073 = vcmp.eq.f32.partialorder %v643, 0.0
        %v1074 = vand.u32 %v643, 2147483648
        %v1075 = vsel %vm1073, %v1074, %v1072
        %v1076 = vrsqrt.pop %v644
        %v1077 = vmul.f32 %v644, %v1076
        %vm1078 = vcmp.eq.f32.partialorder %v644, inf
        %v1079 = vsel %vm1078, %v644, %v1077
        %vm1080 = vcmp.eq.f32.partialorder %v644, 0.0
        %v1081 = vand.u32 %v644, 2147483648
        %v1082 = vsel %vm1080, %v1081, %v1079
        %v1083 = vrsqrt.pop %v645
        %v1084 = vmul.f32 %v645, %v1083
        %vm1085 = vcmp.eq.f32.partialorder %v645, inf
        %v1086 = vsel %vm1085, %v645, %v1084
        %vm1087 = vcmp.eq.f32.partialorder %v645, 0.0
        %v1088 = vand.u32 %v645, 2147483648
        %v1089 = vsel %vm1087, %v1088, %v1086
        %v1090 = vrsqrt.pop %v646
        %v1091 = vmul.f32 %v646, %v1090
        %vm1092 = vcmp.eq.f32.partialorder %v646, inf
        %v1093 = vsel %vm1092, %v646, %v1091
        %vm1094 = vcmp.eq.f32.partialorder %v646, 0.0
        %v1095 = vand.u32 %v646, 2147483648
        %v1096 = vsel %vm1094, %v1095, %v1093
        %v1097 = vrsqrt.pop %v647
        %v1098 = vmul.f32 %v647, %v1097
        %vm1099 = vcmp.eq.f32.partialorder %v647, inf
        %v1100 = vsel %vm1099, %v647, %v1098
        %vm1101 = vcmp.eq.f32.partialorder %v647, 0.0
        %v1102 = vand.u32 %v647, 2147483648
        %v1103 = vsel %vm1101, %v1102, %v1100
        %v1104 = vrsqrt.pop %v648
        %v1105 = vmul.f32 %v648, %v1104
        %vm1106 = vcmp.eq.f32.partialorder %v648, inf
        %v1107 = vsel %vm1106, %v648, %v1105
        %vm1108 = vcmp.eq.f32.partialorder %v648, 0.0
        %v1109 = vand.u32 %v648, 2147483648
        %v1110 = vsel %vm1108, %v1109, %v1107
        %v1111 = vrsqrt.pop %v649
        %v1112 = vmul.f32 %v649, %v1111
        %vm1113 = vcmp.eq.f32.partialorder %v649, inf
        %v1114 = vsel %vm1113, %v649, %v1112
        %vm1115 = vcmp.eq.f32.partialorder %v649, 0.0
        %v1116 = vand.u32 %v649, 2147483648
        %v1117 = vsel %vm1115, %v1116, %v1114
        %v1118 = vrsqrt.pop %v650
        %v1119 = vmul.f32 %v650, %v1118
        %vm1120 = vcmp.eq.f32.partialorder %v650, inf
        %v1121 = vsel %vm1120, %v650, %v1119
        %vm1122 = vcmp.eq.f32.partialorder %v650, 0.0
        %v1123 = vand.u32 %v650, 2147483648
        %v1124 = vsel %vm1122, %v1123, %v1121
        %v1125 = vrsqrt.pop %v651
        %v1126 = vmul.f32 %v651, %v1125
        %vm1127 = vcmp.eq.f32.partialorder %v651, inf
        %v1128 = vsel %vm1127, %v651, %v1126
        %vm1129 = vcmp.eq.f32.partialorder %v651, 0.0
        %v1130 = vand.u32 %v651, 2147483648
        %v1131 = vsel %vm1129, %v1130, %v1128
        %v1132 = vrsqrt.pop %v652
        %v1133 = vmul.f32 %v652, %v1132
        %vm1134 = vcmp.eq.f32.partialorder %v652, inf
        %v1135 = vsel %vm1134, %v652, %v1133
        %vm1136 = vcmp.eq.f32.partialorder %v652, 0.0
        %v1137 = vand.u32 %v652, 2147483648
        %v1138 = vsel %vm1136, %v1137, %v1135
        %v1139 = vrsqrt.pop %v653
        %v1140 = vmul.f32 %v653, %v1139
        %vm1141 = vcmp.eq.f32.partialorder %v653, inf
        %v1142 = vsel %vm1141, %v653, %v1140
        %vm1143 = vcmp.eq.f32.partialorder %v653, 0.0
        %v1144 = vand.u32 %v653, 2147483648
        %v1145 = vsel %vm1143, %v1144, %v1142
        %v1146 = vrsqrt.pop %v654
        %v1147 = vmul.f32 %v654, %v1146
        %vm1148 = vcmp.eq.f32.partialorder %v654, inf
        %v1149 = vsel %vm1148, %v654, %v1147
        %vm1150 = vcmp.eq.f32.partialorder %v654, 0.0
        %v1151 = vand.u32 %v654, 2147483648
        %v1152 = vsel %vm1150, %v1151, %v1149
        %v1153 = vrsqrt.pop %v655
        %v1154 = vmul.f32 %v655, %v1153
        %vm1155 = vcmp.eq.f32.partialorder %v655, inf
        %v1156 = vsel %vm1155, %v655, %v1154
        %vm1157 = vcmp.eq.f32.partialorder %v655, 0.0
        %v1158 = vand.u32 %v655, 2147483648
        %v1159 = vsel %vm1157, %v1158, %v1156
        %v1160 = vrsqrt.pop %v656
        %v1161 = vmul.f32 %v656, %v1160
        %vm1162 = vcmp.eq.f32.partialorder %v656, inf
        %v1163 = vsel %vm1162, %v656, %v1161
        %vm1164 = vcmp.eq.f32.partialorder %v656, 0.0
        %v1165 = vand.u32 %v656, 2147483648
        %v1166 = vsel %vm1164, %v1165, %v1163
        %v1167 = vrsqrt.pop %v657
        %v1168 = vmul.f32 %v657, %v1167
        %vm1169 = vcmp.eq.f32.partialorder %v657, inf
        %v1170 = vsel %vm1169, %v657, %v1168
        %vm1171 = vcmp.eq.f32.partialorder %v657, 0.0
        %v1172 = vand.u32 %v657, 2147483648
        %v1173 = vsel %vm1171, %v1172, %v1170
        %v1174 = vrsqrt.pop %v658
        %v1175 = vmul.f32 %v658, %v1174
        %vm1176 = vcmp.eq.f32.partialorder %v658, inf
        %v1177 = vsel %vm1176, %v658, %v1175
        %vm1178 = vcmp.eq.f32.partialorder %v658, 0.0
        %v1179 = vand.u32 %v658, 2147483648
        %v1180 = vsel %vm1178, %v1179, %v1177
        %v1181 = vrsqrt.pop %v659
        %v1182 = vmul.f32 %v659, %v1181
        %vm1183 = vcmp.eq.f32.partialorder %v659, inf
        %v1184 = vsel %vm1183, %v659, %v1182
        %vm1185 = vcmp.eq.f32.partialorder %v659, 0.0
        %v1186 = vand.u32 %v659, 2147483648
        %v1187 = vsel %vm1185, %v1186, %v1184
        %v1188 = vrsqrt.pop %v660
        %v1189 = vmul.f32 %v660, %v1188
        %vm1190 = vcmp.eq.f32.partialorder %v660, inf
        %v1191 = vsel %vm1190, %v660, %v1189
        %vm1192 = vcmp.eq.f32.partialorder %v660, 0.0
        %v1193 = vand.u32 %v660, 2147483648
        %v1194 = vsel %vm1192, %v1193, %v1191
        %v1195 = vrsqrt.pop %v661
        %v1196 = vmul.f32 %v661, %v1195
        %vm1197 = vcmp.eq.f32.partialorder %v661, inf
        %v1198 = vsel %vm1197, %v661, %v1196
        %vm1199 = vcmp.eq.f32.partialorder %v661, 0.0
        %v1200 = vand.u32 %v661, 2147483648
        %v1201 = vsel %vm1199, %v1200, %v1198
        %v1202 = vrsqrt.pop %v662
        %v1203 = vmul.f32 %v662, %v1202
        %vm1204 = vcmp.eq.f32.partialorder %v662, inf
        %v1205 = vsel %vm1204, %v662, %v1203
        %vm1206 = vcmp.eq.f32.partialorder %v662, 0.0
        %v1207 = vand.u32 %v662, 2147483648
        %v1208 = vsel %vm1206, %v1207, %v1205
        %v1209 = vrsqrt.pop %v663
        %v1210 = vmul.f32 %v663, %v1209
        %vm1211 = vcmp.eq.f32.partialorder %v663, inf
        %v1212 = vsel %vm1211, %v663, %v1210
        %vm1213 = vcmp.eq.f32.partialorder %v663, 0.0
        %v1214 = vand.u32 %v663, 2147483648
        %v1215 = vsel %vm1213, %v1214, %v1212
        %v1216 = vrsqrt.pop %v664
        %v1217 = vmul.f32 %v664, %v1216
        %vm1218 = vcmp.eq.f32.partialorder %v664, inf
        %v1219 = vsel %vm1218, %v664, %v1217
        %vm1220 = vcmp.eq.f32.partialorder %v664, 0.0
        %v1221 = vand.u32 %v664, 2147483648
        %v1222 = vsel %vm1220, %v1221, %v1219
        %v1223 = vrsqrt.pop %v665
        %v1224 = vmul.f32 %v665, %v1223
        %vm1225 = vcmp.eq.f32.partialorder %v665, inf
        %v1226 = vsel %vm1225, %v665, %v1224
        %vm1227 = vcmp.eq.f32.partialorder %v665, 0.0
        %v1228 = vand.u32 %v665, 2147483648
        %v1229 = vsel %vm1227, %v1228, %v1226
        %v1230 = vrsqrt.pop %v666
        %v1231 = vmul.f32 %v666, %v1230
        %vm1232 = vcmp.eq.f32.partialorder %v666, inf
        %v1233 = vsel %vm1232, %v666, %v1231
        %vm1234 = vcmp.eq.f32.partialorder %v666, 0.0
        %v1235 = vand.u32 %v666, 2147483648
        %v1236 = vsel %vm1234, %v1235, %v1233
        %v1237 = vrsqrt.pop %v667
        %v1238 = vmul.f32 %v667, %v1237
        %vm1239 = vcmp.eq.f32.partialorder %v667, inf
        %v1240 = vsel %vm1239, %v667, %v1238
        %vm1241 = vcmp.eq.f32.partialorder %v667, 0.0
        %v1242 = vand.u32 %v667, 2147483648
        %v1243 = vsel %vm1241, %v1242, %v1240
        %v1244 = vrsqrt.pop %v668
        %v1245 = vmul.f32 %v668, %v1244
        %vm1246 = vcmp.eq.f32.partialorder %v668, inf
        %v1247 = vsel %vm1246, %v668, %v1245
        %vm1248 = vcmp.eq.f32.partialorder %v668, 0.0
        %v1249 = vand.u32 %v668, 2147483648
        %v1250 = vsel %vm1248, %v1249, %v1247
        %v1251 = vrsqrt.pop %v669
        %v1252 = vmul.f32 %v669, %v1251
        %vm1253 = vcmp.eq.f32.partialorder %v669, inf
        %v1254 = vsel %vm1253, %v669, %v1252
        %vm1255 = vcmp.eq.f32.partialorder %v669, 0.0
        %v1256 = vand.u32 %v669, 2147483648
        %v1257 = vsel %vm1255, %v1256, %v1254
        %v1258 = vrsqrt.pop %v670
        %v1259 = vmul.f32 %v670, %v1258
        %vm1260 = vcmp.eq.f32.partialorder %v670, inf
        %v1261 = vsel %vm1260, %v670, %v1259
        %vm1262 = vcmp.eq.f32.partialorder %v670, 0.0
        %v1263 = vand.u32 %v670, 2147483648
        %v1264 = vsel %vm1262, %v1263, %v1261
        %v1265 = vrsqrt.pop %v671
        %v1266 = vmul.f32 %v671, %v1265
        %vm1267 = vcmp.eq.f32.partialorder %v671, inf
        %v1268 = vsel %vm1267, %v671, %v1266
        %vm1269 = vcmp.eq.f32.partialorder %v671, 0.0
        %v1270 = vand.u32 %v671, 2147483648
        %v1271 = vsel %vm1269, %v1270, %v1268
        %v1272 = vrsqrt.pop %v672
        %v1273 = vmul.f32 %v672, %v1272
        %vm1274 = vcmp.eq.f32.partialorder %v672, inf
        %v1275 = vsel %vm1274, %v672, %v1273
        %vm1276 = vcmp.eq.f32.partialorder %v672, 0.0
        %v1277 = vand.u32 %v672, 2147483648
        %v1278 = vsel %vm1276, %v1277, %v1275
        %v1279 = vrsqrt.pop %v673
        %v1280 = vmul.f32 %v673, %v1279
        %vm1281 = vcmp.eq.f32.partialorder %v673, inf
        %v1282 = vsel %vm1281, %v673, %v1280
        %vm1283 = vcmp.eq.f32.partialorder %v673, 0.0
        %v1284 = vand.u32 %v673, 2147483648
        %v1285 = vsel %vm1283, %v1284, %v1282
        %v1286 = vrsqrt.pop %v674
        %v1287 = vmul.f32 %v674, %v1286
        %vm1288 = vcmp.eq.f32.partialorder %v674, inf
        %v1289 = vsel %vm1288, %v674, %v1287
        %vm1290 = vcmp.eq.f32.partialorder %v674, 0.0
        %v1291 = vand.u32 %v674, 2147483648
        %v1292 = vsel %vm1290, %v1291, %v1289
        %v1293 = vrsqrt.pop %v675
        %v1294 = vmul.f32 %v675, %v1293
        %vm1295 = vcmp.eq.f32.partialorder %v675, inf
        %v1296 = vsel %vm1295, %v675, %v1294
        %vm1297 = vcmp.eq.f32.partialorder %v675, 0.0
        %v1298 = vand.u32 %v675, 2147483648
        %v1299 = vsel %vm1297, %v1298, %v1296
        %v1300 = vrsqrt.pop %v676
        %v1301 = vmul.f32 %v676, %v1300
        %vm1302 = vcmp.eq.f32.partialorder %v676, inf
        %v1303 = vsel %vm1302, %v676, %v1301
        %vm1304 = vcmp.eq.f32.partialorder %v676, 0.0
        %v1305 = vand.u32 %v676, 2147483648
        %v1306 = vsel %vm1304, %v1305, %v1303
        %v1307 = vrsqrt.pop %v677
        %v1308 = vmul.f32 %v677, %v1307
        %vm1309 = vcmp.eq.f32.partialorder %v677, inf
        %v1310 = vsel %vm1309, %v677, %v1308
        %vm1311 = vcmp.eq.f32.partialorder %v677, 0.0
        %v1312 = vand.u32 %v677, 2147483648
        %v1313 = vsel %vm1311, %v1312, %v1310
        %v1314 = vrsqrt.pop %v678
        %v1315 = vmul.f32 %v678, %v1314
        %vm1316 = vcmp.eq.f32.partialorder %v678, inf
        %v1317 = vsel %vm1316, %v678, %v1315
        %vm1318 = vcmp.eq.f32.partialorder %v678, 0.0
        %v1319 = vand.u32 %v678, 2147483648
        %v1320 = vsel %vm1318, %v1319, %v1317
        %v1321 = vrsqrt.pop %v679
        %v1322 = vmul.f32 %v679, %v1321
        %vm1323 = vcmp.eq.f32.partialorder %v679, inf
        %v1324 = vsel %vm1323, %v679, %v1322
        %vm1325 = vcmp.eq.f32.partialorder %v679, 0.0
        %v1326 = vand.u32 %v679, 2147483648
        %v1327 = vsel %vm1325, %v1326, %v1324
        %v1328 = vrsqrt.pop %v680
        %v1329 = vmul.f32 %v680, %v1328
        %vm1330 = vcmp.eq.f32.partialorder %v680, inf
        %v1331 = vsel %vm1330, %v680, %v1329
        %vm1332 = vcmp.eq.f32.partialorder %v680, 0.0
        %v1333 = vand.u32 %v680, 2147483648
        %v1334 = vsel %vm1332, %v1333, %v1331
        %v1335 = vrsqrt.pop %v681
        %v1336 = vmul.f32 %v681, %v1335
        %vm1337 = vcmp.eq.f32.partialorder %v681, inf
        %v1338 = vsel %vm1337, %v681, %v1336
        %vm1339 = vcmp.eq.f32.partialorder %v681, 0.0
        %v1340 = vand.u32 %v681, 2147483648
        %v1341 = vsel %vm1339, %v1340, %v1338
        %v1342 = vrsqrt.pop %v682
        %v1343 = vmul.f32 %v682, %v1342
        %vm1344 = vcmp.eq.f32.partialorder %v682, inf
        %v1345 = vsel %vm1344, %v682, %v1343
        %vm1346 = vcmp.eq.f32.partialorder %v682, 0.0
        %v1347 = vand.u32 %v682, 2147483648
        %v1348 = vsel %vm1346, %v1347, %v1345
        %v1349 = vrsqrt.pop %v683
        %v1350 = vmul.f32 %v683, %v1349
        %vm1351 = vcmp.eq.f32.partialorder %v683, inf
        %v1352 = vsel %vm1351, %v683, %v1350
        %vm1353 = vcmp.eq.f32.partialorder %v683, 0.0
        %v1354 = vand.u32 %v683, 2147483648
        %v1355 = vsel %vm1353, %v1354, %v1352
        %v1356 = vadd.f32 %v690, %v697
        %v1357 = vadd.f32 %v1356, %v704
        %v1358 = vadd.f32 %v1357, %v711
        %v1359 = vadd.f32 %v1358, %v718
        %v1360 = vadd.f32 %v1359, %v725
        %v1361 = vadd.f32 %v1360, %v732
        %v1362 = vadd.f32 %v1361, %v739
        %v1363 = vadd.f32 %v1362, %v746
        %v1364 = vadd.f32 %v1363, %v753
        %v1365 = vadd.f32 %v1364, %v760
        %v1366 = vadd.f32 %v1365, %v767
        %v1367 = vadd.f32 %v1366, %v774
        %v1368 = vadd.f32 %v1367, %v781
        %v1369 = vadd.f32 %v1368, %v788
        %v1370 = vadd.f32 %v1369, %v795
        %v1371 = vadd.f32 %v1370, %v802
        %v1372 = vadd.f32 %v1371, %v809
        %v1373 = vadd.f32 %v1372, %v816
        %v1374 = vadd.f32 %v1373, %v823
        %v1375 = vadd.f32 %v1374, %v830
        %v1376 = vadd.f32 %v1375, %v837
        %v1377 = vadd.f32 %v1376, %v844
        %v1378 = vadd.f32 %v1377, %v851
        %v1379 = vadd.f32 %v1378, %v858
        %v1380 = vadd.f32 %v1379, %v865
        %v1381 = vadd.f32 %v1380, %v872
        %v1382 = vadd.f32 %v1381, %v879
        %v1383 = vadd.f32 %v1382, %v886
        %v1384 = vadd.f32 %v1383, %v893
        %v1385 = vadd.f32 %v1384, %v900
        %v1386 = vadd.f32 %v1385, %v907
        %v1387 = vadd.f32 %v1386, %v914
        %v1388 = vadd.f32 %v1387, %v921
        %v1389 = vadd.f32 %v1388, %v928
        %v1390 = vadd.f32 %v1389, %v935
        %v1391 = vadd.f32 %v1390, %v942
        %v1392 = vadd.f32 %v1391, %v949
        %v1393 = vadd.f32 %v1392, %v956
        %v1394 = vadd.f32 %v1393, %v963
        %v1395 = vadd.f32 %v1394, %v970
        %v1396 = vadd.f32 %v1395, %v977
        %v1397 = vadd.f32 %v1396, %v984
        %v1398 = vadd.f32 %v1397, %v991
        %v1399 = vadd.f32 %v1398, %v998
        %v1400 = vadd.f32 %v1399, %v1005
        %v1401 = vadd.f32 %v1400, %v1012
        %v1402 = vadd.f32 %v1401, %v1019
        %v1403 = vadd.f32 %v1402, %v1026
        %v1404 = vadd.f32 %v1403, %v1033
        %v1405 = vadd.f32 %v1404, %v1040
        %v1406 = vadd.f32 %v1405, %v1047
        %v1407 = vadd.f32 %v1406, %v1054
        %v1408 = vadd.f32 %v1407, %v1061
        %v1409 = vadd.f32 %v1408, %v1068
        %v1410 = vadd.f32 %v1409, %v1075
        %v1411 = vadd.f32 %v1410, %v1082
        %v1412 = vadd.f32 %v1411, %v1089
        %v1413 = vadd.f32 %v1412, %v1096
        %v1414 = vadd.f32 %v1413, %v1103
        %v1415 = vadd.f32 %v1414, %v1110
        %v1416 = vadd.f32 %v1415, %v1117
        %v1417 = vadd.f32 %v1416, %v1124
        %v1418 = vadd.f32 %v1417, %v1131
        %v1419 = vadd.f32 %v1418, %v1138
        %v1420 = vadd.f32 %v1419, %v1145
        %v1421 = vadd.f32 %v1420, %v1152
        %v1422 = vadd.f32 %v1421, %v1159
        %v1423 = vadd.f32 %v1422, %v1166
        %v1424 = vadd.f32 %v1423, %v1173
        %v1425 = vadd.f32 %v1424, %v1180
        %v1426 = vadd.f32 %v1425, %v1187
        %v1427 = vadd.f32 %v1426, %v1194
        %v1428 = vadd.f32 %v1427, %v1201
        %v1429 = vadd.f32 %v1428, %v1208
        %v1430 = vadd.f32 %v1429, %v1215
        %v1431 = vadd.f32 %v1430, %v1222
        %v1432 = vadd.f32 %v1431, %v1229
        %v1433 = vadd.f32 %v1432, %v1236
        %v1434 = vadd.f32 %v1433, %v1243
        %v1435 = vadd.f32 %v1434, %v1250
        %v1436 = vadd.f32 %v1435, %v1257
        %v1437 = vadd.f32 %v1436, %v1264
        %v1438 = vadd.f32 %v1437, %v1271
        %v1439 = vadd.f32 %v1438, %v1278
        %v1440 = vadd.f32 %v1439, %v1285
        %v1441 = vadd.f32 %v1440, %v1292
        %v1442 = vadd.f32 %v1441, %v1299
        %v1443 = vadd.f32 %v1442, %v1306
        %v1444 = vadd.f32 %v1443, %v1313
        %v1445 = vadd.f32 %v1444, %v1320
        %v1446 = vadd.f32 %v1445, %v1327
        %v1447 = vadd.f32 %v1446, %v1334
        %v1448 = vadd.f32 %v1447, %v1341
        %v1449 = vadd.f32 %v1448, %v1348
        %v1450 = vadd.f32 %v1449, %v1355
        %1451 = vst [vmem:[%s201] sm:$0xff] %v1450
        %s1452 = sand.u32 %s82, 1
        %s1453 = scalar_lea.sflag [#allocation4], %s1452
        %s1454 = sand.u32 %s82, 1
        %s1455 = smul.addr %s1454, 8
        %s1456 = scalar_lea.vmem [#allocation7], %s1455
        // Predicated region
        $region37: #{tpu_custom_call.1} parent=27 // pred_check
          %p1457 = pneg %p92
        $region38: #{tpu_custom_call.1} parent=27 // pred_check_branch
          %1459 = sbr.rel (%p1457) target = $region40
        $region39: #{tpu_custom_call.1} parent=27 // pred_region
          %s1461 = ssub.s32 128, 128
          %1462 = vsyncadd %s1453, %s1461
          %s1463 = smul.addr %s22, 128
          %s1464 = scalar_lea.hbm %s2, %s1463
          %s1466 = sshll.u32 %s1456, 4
          %s1467 = int_to_ptr.vmem [resolvable:$true] %s1466
          %1469 = dma.vmem_to_hbm [thread:$0]  %s1467, 128, %s1464, %s1453
        $region40: #{tpu_custom_call.1} parent=27 // pred_fallthru
          _
      $region28: #{tpu_custom_call.1} parent=5 // pred_fallthru
        _
      %p1470 = scmp.le.s32.totalorder 2, %s17
      // Predicated region
      $region41: #{tpu_custom_call.1} parent=5 // pred_check
        %p1471 = pneg %p1470
      $region42: #{tpu_custom_call.1} parent=5 // pred_check_branch
        %1473 = sbr.rel (%p1471) target = $region44
      $region43: #{tpu_custom_call.1} parent=5 // pred_region
        %s1474 = ssub.s32 %s17, 2
        // Predicated region
        $region45: #{tpu_custom_call.1} parent=43 // pred_check
          %p1475 = pneg %p98
        $region46: #{tpu_custom_call.1} parent=43 // pred_check_branch
          %1477 = sbr.rel (%p1475) target = $region48
        $region47: #{tpu_custom_call.1} parent=43 // pred_region
          %s1478 = sand.u32 %s83, 1
          %s1479 = scalar_lea.sflag [#allocation4], %s1478
          %s1480 = sand.u32 %s83, 1
          %s1481 = smul.addr %s1480, 8
          %s1482 = scalar_lea.vmem [#allocation7], %s1481
          %1483 = dma.done %s1479, 128
        $region48: #{tpu_custom_call.1} parent=43 // pred_fallthru
          _
      $region44: #{tpu_custom_call.1} parent=5 // pred_fallthru
        _
    $region6: #{tpu_custom_call.1} parent=1 // loop_footer
      %s21 = sadd.s32 1, %s17
    $region7: #{tpu_custom_call.1} parent=1 // loop_footer_branch
      %16 = sbr.rel target = $region3
    $region8: #{tpu_custom_call.1} parent=1 // loop_exit
      _
    %1484 = vsyncpa [#allocation3], 1
    %s1485 = scalar_lea.sflag [#allocation3], 1
    %1486 = vsyncpa %s1485, 1
    %1487 = vsyncpa [#allocation6], 1
    %s1488 = scalar_lea.sflag [#allocation6], 1
    %1489 = vsyncpa %s1488, 1
    %1490 = vsyncpa [#allocation4], 1
    %s1491 = scalar_lea.sflag [#allocation4], 1
    %1492 = vsyncpa %s1491, 1

</llo_original>
